<compile_context>
chip_gen: v7x
topology: tpu7x:2x2x1
jax: 0.10.0
libtpu: 0.0.40
codegen_flags: <defaults>
</compile_context>

<pallas_src>
import math

import jax
import jax.numpy as jnp
from jax import lax
from jax.experimental import pallas as pl
from jax.experimental.pallas import tpu as pltpu


def _round_up(x, m):
    return (x + m - 1) // m * m


# ---------------------------------------------------------------------------
# Kernel builder
# ---------------------------------------------------------------------------
def _make_kernel(temperature, eps, batch, b_pad, tile_m, tile_n,
                 compute_orig, compute_cross):
    """Builds the streamed NTXent kernel with all static config baked in."""
    inv_t = 1.0 / float(temperature)
    eps = float(eps)
    n_out = int(compute_orig) + int(compute_cross)
    pad_cols = b_pad - batch                      # compile-time constant
    nt_dims = (((1,), (1,)), ((), ()))            # contract last dims (NT form)
    n_lane_groups = tile_n // 128

    def _fold_lanes(e):
        # (tile_m, tile_n) -> (tile_m, 128): VALU-only vreg adds.  The single
        # cross-lane (XLU) reduce is deferred to the per-row-tile finalize.
        if n_lane_groups == 1:
            return e
        acc = e[:, 0:128]
        for g in range(1, n_lane_groups):
            acc = acc + e[:, g * 128:(g + 1) * 128]
        return acc

    def kernel(*refs):
        x1r_ref, x2r_ref, x1c_ref, x2c_ref = refs[:4]
        out_refs = refs[4:4 + n_out]
        tot1_ref, tot2_ref, xs1_ref, xs2_ref = refs[4 + n_out:]

        i = pl.program_id(0)
        j = pl.program_id(1)
        n_j = pl.num_programs(1)

        @pl.when(j == 0)
        def _init():
            tot1_ref[...] = jnp.zeros_like(tot1_ref)
            tot2_ref[...] = jnp.zeros_like(tot2_ref)
            xs1_ref[...] = jnp.zeros_like(xs1_ref)
            xs2_ref[...] = jnp.zeros_like(xs2_ref)

        # Inputs are pre-normalized in the wrapper; just load the blocks.
        r1 = x1r_ref[...]            # (tile_m, D) modality-1 row block
        r2 = x2r_ref[...]            # (tile_m, D) modality-2 row block
        c1 = x1c_ref[...]            # (tile_n, D) modality-1 col block
        c2 = x2c_ref[...]            # (tile_n, D) modality-2 col block

        def _exp_fold(a, b):
            s = lax.dot_general(a, b, nt_dims,
                                preferred_element_type=jnp.float32)
            return _fold_lanes(jnp.exp(s * inv_t))        # (tile_m, 128)

        f12 = _exp_fold(r1, c2)      # mod1 rows vs mod2 cols
        f21 = _exp_fold(r2, c1)      # mod2 rows vs mod1 cols
        if compute_orig:
            f11 = _exp_fold(r1, c1)
            f22 = _exp_fold(r2, c2)
            tot1_ref[...] += f11 + f12
            tot2_ref[...] += f21 + f22
        if compute_cross:
            xs1_ref[...] += f12
            xs2_ref[...] += f21

        @pl.when(j == n_j - 1)
        def _finalize():
            # log(pos) = (n1 . n2) / temperature  (shared by both modality rows)
            log_pos = jnp.sum(r1.astype(jnp.float32) * r2.astype(jnp.float32),
                              axis=-1, keepdims=True) * inv_t
            if pad_cols > 0:
                row_ids = i * tile_m + lax.broadcasted_iota(
                    jnp.int32, (tile_m, 1), 0)
                row_mask = (row_ids < batch).astype(jnp.float32)
            else:
                row_mask = None

            def _rowsum(acc_ref, sub):
                # One XLU cross-lane reduce per accumulator per row tile.
                s = jnp.sum(acc_ref[...], axis=-1, keepdims=True)
                return s - sub

            idx = 0
            if compute_orig:
                # Padded columns are zero vectors -> each contributed exp(0)=1
                # to BOTH the same- and cross-modality sums -> remove
                # 2 * pad_cols, then the reference's row_sub = e and clamp.
                neg1 = jnp.maximum(
                    _rowsum(tot1_ref, 2.0 * pad_cols) - math.e, eps)
                neg2 = jnp.maximum(
                    _rowsum(tot2_ref, 2.0 * pad_cols) - math.e, eps)
                per_row = (jnp.log(neg1 + eps) - log_pos) + \
                          (jnp.log(neg2 + eps) - log_pos)
                if row_mask is not None:
                    per_row = per_row * row_mask
                out_refs[idx][...] = jnp.full(out_refs[idx].shape,
                                              jnp.sum(per_row), jnp.float32)
                idx += 1
            if compute_cross:
                neg1 = _rowsum(xs1_ref, 1.0 * pad_cols)
                neg2 = _rowsum(xs2_ref, 1.0 * pad_cols)
                per_row = (jnp.log(neg1 + eps) - log_pos) + \
                          (jnp.log(neg2 + eps) - log_pos)
                if row_mask is not None:
                    per_row = per_row * row_mask
                out_refs[idx][...] = jnp.full(out_refs[idx].shape,
                                              jnp.sum(per_row), jnp.float32)

    return kernel


# ---------------------------------------------------------------------------
# Wrapper: normalization, padding, tile sizing, pallas_call
# ---------------------------------------------------------------------------
def _vmem_budget_bytes():
    cap = 64 * 1024 * 1024
    try:
        info = pltpu.get_tpu_info()
        cap = int(getattr(info, "vmem_capacity_bytes", cap))
    except Exception:
        pass
    # Headroom for Mosaic internal scratch: v7x (64 MiB/TC) -> 48 MiB,
    # v5e/v6e (128 MiB) -> capped at 96 MiB.
    return max(16 * 1024 * 1024, min(cap * 3 // 4, 96 * 1024 * 1024))


def _pow2_tile_floor(x):
    t = 128
    while t * 2 <= x:
        t *= 2
    return min(t, 1024)


def _choose_tiles(B, D_pad, itemsize, budget, block_rows):
    b128 = _round_up(B, 128)
    if block_rows is not None:
        tile_m = _pow2_tile_floor(max(128, _round_up(block_rows, 128)))
    else:
        tile_m = 128
        for tm in (1024, 512, 256, 128):
            tn = min(256, tm)
            need = (4 * tm * D_pad * itemsize      # 2 row inputs x 2 buffers
                    + 4 * tn * D_pad * itemsize    # 2 col inputs x 2 buffers
                    + 4 * tm * 128 * 4             # (tile_m,128) f32 accums
                    + 6 * tm * tn * 4)             # live exp/sim intermediates
            if need <= int(budget * 0.8):
                tile_m = tm
                break
    while tile_m > b128:        # don't exceed the (128-rounded) batch
        tile_m //= 2
    tile_m = max(tile_m, 128)
    tile_n = min(256, tile_m)   # tile_n divides tile_m -> divides B_pad
    return tile_m, tile_n


def _run_kernel(mod1, mod2, temperature, eps, compute_orig, compute_cross,
                block_rows=None, matmul_dtype=None):
    assert mod1.shape == mod2.shape, "both modalities must have the same shape"
    B, D = mod1.shape
    D_pad = _round_up(D, 128)

    # F.normalize(x, p=2, dim=1, eps=1e-12) -- once, in the wrapper (one fused
    # memory-bound XLA pass), instead of per grid step inside the kernel.
    def _normalize(x):
        x = x.astype(jnp.float32)
        nrm = jnp.sqrt(jnp.sum(x * x, axis=-1, keepdims=True))
        return x / jnp.maximum(nrm, 1e-12)

    if matmul_dtype is None:
        matmul_dtype = (jnp.bfloat16 if mod1.dtype == jnp.bfloat16
                        else jnp.float32)
    n1 = _normalize(mod1).astype(matmul_dtype)
    n2 = _normalize(mod2).astype(matmul_dtype)

    itemsize = jnp.dtype(matmul_dtype).itemsize
    budget = _vmem_budget_bytes()
    tile_m, tile_n = _choose_tiles(B, D_pad, itemsize, budget, block_rows)

    B_pad = _round_up(B, tile_m)
    if (B_pad, D_pad) != (B, D):
        pad = ((0, B_pad - B), (0, D_pad - D))
        n1 = jnp.pad(n1, pad)        # padded rows/cols are exact zero vectors
        n2 = jnp.pad(n2, pad)

    g_m = B_pad // tile_m
    g_n = B_pad // tile_n
    n_out = int(compute_orig) + int(compute_cross)

    kernel = _make_kernel(temperature, eps, B, B_pad, tile_m, tile_n,
                          compute_orig, compute_cross)

    row_spec = pl.BlockSpec((tile_m, D_pad), lambda i, j: (i, 0))
    col_spec = pl.BlockSpec((tile_n, D_pad), lambda i, j: (j, 0))
    out_specs = [pl.BlockSpec((1, 8, 128), lambda i, j: (i, 0, 0))
                 for _ in range(n_out)]
    out_shape = [jax.ShapeDtypeStruct((g_m, 8, 128), jnp.float32)
                 for _ in range(n_out)]

    grid_spec = pltpu.PrefetchScalarGridSpec(
        num_scalar_prefetch=0,
        grid=(g_m, g_n),                            # (row tiles, col tiles)
        in_specs=[row_spec, row_spec, col_spec, col_spec],
        out_specs=out_specs,
        scratch_shapes=[pltpu.VMEM((tile_m, 128), jnp.float32)] * 4,
    )

    res = pl.pallas_call(
        kernel,
        out_shape=out_shape,
        grid_spec=grid_spec,
        compiler_params=pltpu.CompilerParams(
            dimension_semantics=("parallel", "arbitrary"),
            vmem_limit_bytes=budget,
        ),
    )(n1, n2, n1, n2)

    if not isinstance(res, (list, tuple)):
        res = [res]
    # Per-row-tile partials -> final scalars.
    return tuple(jnp.sum(o[:, 0, 0]) for o in res)


def ntxent_loss(mod1, mod2, type="orig", temperature=1.0, eps=1e-6,
                block_rows=None, matmul_dtype=None):
    """Pallas implementation of NTXentLoss.forward."""
    if type == "orig":
        (loss_o,) = _run_kernel(mod1, mod2, temperature, eps, True, False,
                                block_rows, matmul_dtype)
        return loss_o
    if type == "cross":
        (loss_c,) = _run_kernel(mod1, mod2, temperature, eps, False, True,
                                block_rows, matmul_dtype)
        return loss_c
    if type == "both":
        loss_o, loss_c = _run_kernel(mod1, mod2, temperature, eps, True, True,
                                     block_rows, matmul_dtype)
        return loss_o, loss_c
    raise Exception("Wrong NTXent loss type, must be: 'cross', 'orig' or 'both'")


# ---------------------------------------------------------------------------
# Pure-JAX reference (written exactly like the PyTorch module)
# ---------------------------------------------------------------------------
def _reference(mod1, mod2, temperature=1.0, eps=1e-6):
    mod1 = mod1.astype(jnp.float32)
    mod2 = mod2.astype(jnp.float32)
    B = mod1.shape[0]
    n1 = mod1 / jnp.maximum(jnp.linalg.norm(mod1, axis=-1, keepdims=True), 1e-12)
    n2 = mod2 / jnp.maximum(jnp.linalg.norm(mod2, axis=-1, keepdims=True), 1e-12)
    out = jnp.concatenate([n1, n2], axis=0)
    sim = jnp.exp(out @ out.T / temperature)
    pos = jnp.exp(jnp.sum(n1 * n2, axis=-1) / temperature)
    pos = jnp.concatenate([pos, pos], axis=0)
    # orig (note: row_sub = math.e exactly as in the PyTorch module)
    neg_o = jnp.maximum(jnp.sum(sim, axis=-1) - math.e, eps)
    loss_o = -jnp.sum(jnp.log(pos / (neg_o + eps)))
    # cross
    rows = jnp.arange(2 * B)[:, None]
    cols = jnp.arange(2 * B)[None, :]
    mask = ((rows < B) != (cols < B)).astype(jnp.float32)
    neg_c = jnp.sum(sim * mask, axis=-1)
    loss_c = -jnp.sum(jnp.log(pos / (neg_c + eps)))
    return loss_o, loss_c


if __name__ == "__main__":
    key = jax.random.PRNGKey(0)
    k1, k2, k3, k4 = jax.random.split(key, 4)

    # Case 1: small case, both losses (single (128,128)-padded tile).
    B, D = 8, 32
    m1 = jax.random.normal(k1, (B, D), dtype=jnp.float32)
    m2 = jax.random.normal(k2, (B, D), dtype=jnp.float32)
    loss_o, loss_c = ntxent_loss(m1, m2, type="both")
    jax.block_until_ready((loss_o, loss_c))
    ref_o, ref_c = _reference(m1, m2)
    assert jnp.allclose(loss_o, ref_o, rtol=1e-4, atol=1e-3), (loss_o, ref_o)
    assert jnp.allclose(loss_c, ref_c, rtol=1e-4, atol=1e-3), (loss_c, ref_c)

    # Single-type (gated) paths, including a non-default temperature.
    lo_only = ntxent_loss(m1, m2, type="orig")
    lc_only = ntxent_loss(m1, m2, type="cross", temperature=0.5)
    ref_o2, ref_c2 = _reference(m1, m2, temperature=0.5)
    jax.block_until_ready((lo_only, lc_only))
    assert jnp.allclose(lo_only, ref_o, rtol=1e-4, atol=1e-3), (lo_only, ref_o)
    assert jnp.allclose(lc_only, ref_c2, rtol=1e-4, atol=1e-3), (lc_only, ref_c2)

    # Case 2: ragged batch (padding + constant column correction + row mask)
    # and a multi-tile (2 x 2) grid forced via block_rows=128.
    B2, D2 = 200, 48
    m3 = jax.random.normal(k3, (B2, D2), dtype=jnp.float32)
    m4 = jax.random.normal(k4, (B2, D2), dtype=jnp.float32)
    loss_o2, loss_c2 = ntxent_loss(m3, m4, type="both", temperature=0.7,
                                   block_rows=128)
    jax.block_until_ready((loss_o2, loss_c2))
    ref_o3, ref_c3 = _reference(m3, m4, temperature=0.7)
    assert jnp.allclose(loss_o2, ref_o3, rtol=1e-4, atol=1e-3), (loss_o2, ref_o3)
    assert jnp.allclose(loss_c2, ref_c3, rtol=1e-4, atol=1e-3), (loss_c2, ref_c3)

    print("KERNEL_OK")
</pallas_src>

<mosaic_0001>
module attributes {stable_mosaic.version = 11 : i64} {
  func.func @kernel(%arg0: i32, %arg1: i32, %arg2: memref<128x128xf32, #tpu.memory_space<vmem>>, %arg3: memref<128x128xf32, #tpu.memory_space<vmem>>, %arg4: memref<128x128xf32, #tpu.memory_space<vmem>>, %arg5: memref<128x128xf32, #tpu.memory_space<vmem>>, %arg6: memref<1x8x128xf32, #tpu.memory_space<vmem>>, %arg7: memref<1x8x128xf32, #tpu.memory_space<vmem>>, %arg8: memref<128x128xf32, #tpu.memory_space<vmem>>, %arg9: memref<128x128xf32, #tpu.memory_space<vmem>>, %arg10: memref<128x128xf32, #tpu.memory_space<vmem>>, %arg11: memref<128x128xf32, #tpu.memory_space<vmem>>) attributes {dimension_semantics = [#tpu.dimension_semantics<parallel>, #tpu.dimension_semantics<arbitrary>], iteration_bounds = array<i64: 1, 1>, scalar_prefetch = 0 : i64, scratch_operands = 4 : i64, tpu.core_type = #tpu.core_type<tc>, window_params = [{transform_indices = @transform_0, window_bounds = array<i64: 128, 128>}, {transform_indices = @transform_1, window_bounds = array<i64: 128, 128>}, {transform_indices = @transform_2, window_bounds = array<i64: 128, 128>}, {transform_indices = @transform_3, window_bounds = array<i64: 128, 128>}, {transform_indices = @transform_4, window_bounds = array<i64: 1, 8, 128>}, {transform_indices = @transform_5, window_bounds = array<i64: 1, 8, 128>}]} {
    %c0_i32 = arith.constant 0 : i32
    %0 = arith.cmpi eq, %arg1, %c0_i32 : i32
    %1 = arith.extui %0 : i1 to i32
    %c0_i32_0 = arith.constant 0 : i32
    %2 = arith.cmpi ne, %1, %c0_i32_0 : i32
    scf.if %2 {
      %cst_33 = arith.constant 0.000000e+00 : f32
      %40 = vector.broadcast %cst_33 : f32 to vector<128x128xf32>
      %c0_34 = arith.constant 0 : index
      %c0_35 = arith.constant 0 : index
      %41 = vector.load %arg8[%c0_34, %c0_35] : memref<128x128xf32, #tpu.memory_space<vmem>>, vector<128x128xf32>
      tpu.vector_store %arg8[%c0_34, %c0_35], %40 {strides = array<i32>} : memref<128x128xf32, #tpu.memory_space<vmem>>, vector<128x128xf32>,
      %cst_36 = arith.constant 0.000000e+00 : f32
      %42 = vector.broadcast %cst_36 : f32 to vector<128x128xf32>
      %c0_37 = arith.constant 0 : index
      %c0_38 = arith.constant 0 : index
      %43 = vector.load %arg9[%c0_37, %c0_38] : memref<128x128xf32, #tpu.memory_space<vmem>>, vector<128x128xf32>
      tpu.vector_store %arg9[%c0_37, %c0_38], %42 {strides = array<i32>} : memref<128x128xf32, #tpu.memory_space<vmem>>, vector<128x128xf32>,
      %cst_39 = arith.constant 0.000000e+00 : f32
      %44 = vector.broadcast %cst_39 : f32 to vector<128x128xf32>
      %c0_40 = arith.constant 0 : index
      %c0_41 = arith.constant 0 : index
      %45 = vector.load %arg10[%c0_40, %c0_41] : memref<128x128xf32, #tpu.memory_space<vmem>>, vector<128x128xf32>
      tpu.vector_store %arg10[%c0_40, %c0_41], %44 {strides = array<i32>} : memref<128x128xf32, #tpu.memory_space<vmem>>, vector<128x128xf32>,
      %cst_42 = arith.constant 0.000000e+00 : f32
      %46 = vector.broadcast %cst_42 : f32 to vector<128x128xf32>
      %c0_43 = arith.constant 0 : index
      %c0_44 = arith.constant 0 : index
      %47 = vector.load %arg11[%c0_43, %c0_44] : memref<128x128xf32, #tpu.memory_space<vmem>>, vector<128x128xf32>
      tpu.vector_store %arg11[%c0_43, %c0_44], %46 {strides = array<i32>} : memref<128x128xf32, #tpu.memory_space<vmem>>, vector<128x128xf32>,
    } else {
    }
    %c0 = arith.constant 0 : index
    %c0_1 = arith.constant 0 : index
    %3 = vector.load %arg2[%c0, %c0_1] : memref<128x128xf32, #tpu.memory_space<vmem>>, vector<128x128xf32>
    %c0_2 = arith.constant 0 : index
    %c0_3 = arith.constant 0 : index
    %4 = vector.load %arg3[%c0_2, %c0_3] : memref<128x128xf32, #tpu.memory_space<vmem>>, vector<128x128xf32>
    %c0_4 = arith.constant 0 : index
    %c0_5 = arith.constant 0 : index
    %5 = vector.load %arg4[%c0_4, %c0_5] : memref<128x128xf32, #tpu.memory_space<vmem>>, vector<128x128xf32>
    %c0_6 = arith.constant 0 : index
    %c0_7 = arith.constant 0 : index
    %6 = vector.load %arg5[%c0_6, %c0_7] : memref<128x128xf32, #tpu.memory_space<vmem>>, vector<128x128xf32>
    %cst = arith.constant dense<0.000000e+00> : vector<128x128xf32>
    %7 = tpu.matmul %3, %6, %cst {dimension_numbers = #tpu.dot_dimension_numbers<[1], [1], [0], [0], [0, 0, 1, 0], [], []>} : vector<128x128xf32>, vector<128x128xf32>, vector<128x128xf32> -> vector<128x128xf32>
    %cst_8 = arith.constant 1.000000e+00 : f32
    %8 = vector.broadcast %cst_8 : f32 to vector<128x128xf32>
    %9 = arith.mulf %7, %8 : vector<128x128xf32>
    %10 = math.exp %9 : vector<128x128xf32>
    %cst_9 = arith.constant dense<0.000000e+00> : vector<128x128xf32>
    %11 = tpu.matmul %4, %5, %cst_9 {dimension_numbers = #tpu.dot_dimension_numbers<[1], [1], [0], [0], [0, 0, 1, 0], [], []>} : vector<128x128xf32>, vector<128x128xf32>, vector<128x128xf32> -> vector<128x128xf32>
    %cst_10 = arith.constant 1.000000e+00 : f32
    %12 = vector.broadcast %cst_10 : f32 to vector<128x128xf32>
    %13 = arith.mulf %11, %12 : vector<128x128xf32>
    %14 = math.exp %13 : vector<128x128xf32>
    %cst_11 = arith.constant dense<0.000000e+00> : vector<128x128xf32>
    %15 = tpu.matmul %3, %5, %cst_11 {dimension_numbers = #tpu.dot_dimension_numbers<[1], [1], [0], [0], [0, 0, 1, 0], [], []>} : vector<128x128xf32>, vector<128x128xf32>, vector<128x128xf32> -> vector<128x128xf32>
    %cst_12 = arith.constant 1.000000e+00 : f32
    %16 = vector.broadcast %cst_12 : f32 to vector<128x128xf32>
    %17 = arith.mulf %15, %16 : vector<128x128xf32>
    %18 = math.exp %17 : vector<128x128xf32>
    %cst_13 = arith.constant dense<0.000000e+00> : vector<128x128xf32>
    %19 = tpu.matmul %4, %6, %cst_13 {dimension_numbers = #tpu.dot_dimension_numbers<[1], [1], [0], [0], [0, 0, 1, 0], [], []>} : vector<128x128xf32>, vector<128x128xf32>, vector<128x128xf32> -> vector<128x128xf32>
    %cst_14 = arith.constant 1.000000e+00 : f32
    %20 = vector.broadcast %cst_14 : f32 to vector<128x128xf32>
    %21 = arith.mulf %19, %20 : vector<128x128xf32>
    %22 = math.exp %21 : vector<128x128xf32>
    %c0_15 = arith.constant 0 : index
    %c0_16 = arith.constant 0 : index
    %23 = vector.load %arg8[%c0_15, %c0_16] : memref<128x128xf32, #tpu.memory_space<vmem>>, vector<128x128xf32>
    %24 = arith.addf %18, %10 : vector<128x128xf32>
    %25 = arith.addf %23, %24 : vector<128x128xf32>
    %c0_17 = arith.constant 0 : index
    %c0_18 = arith.constant 0 : index
    %26 = vector.load %arg8[%c0_17, %c0_18] : memref<128x128xf32, #tpu.memory_space<vmem>>, vector<128x128xf32>
    tpu.vector_store %arg8[%c0_17, %c0_18], %25 {strides = array<i32>} : memref<128x128xf32, #tpu.memory_space<vmem>>, vector<128x128xf32>,
    %c0_19 = arith.constant 0 : index
    %c0_20 = arith.constant 0 : index
    %27 = vector.load %arg9[%c0_19, %c0_20] : memref<128x128xf32, #tpu.memory_space<vmem>>, vector<128x128xf32>
    %28 = arith.addf %14, %22 : vector<128x128xf32>
    %29 = arith.addf %27, %28 : vector<128x128xf32>
    %c0_21 = arith.constant 0 : index
    %c0_22 = arith.constant 0 : index
    %30 = vector.load %arg9[%c0_21, %c0_22] : memref<128x128xf32, #tpu.memory_space<vmem>>, vector<128x128xf32>
    tpu.vector_store %arg9[%c0_21, %c0_22], %29 {strides = array<i32>} : memref<128x128xf32, #tpu.memory_space<vmem>>, vector<128x128xf32>,
    %c0_23 = arith.constant 0 : index
    %c0_24 = arith.constant 0 : index
    %31 = vector.load %arg10[%c0_23, %c0_24] : memref<128x128xf32, #tpu.memory_space<vmem>>, vector<128x128xf32>
    %32 = arith.addf %31, %10 : vector<128x128xf32>
    %c0_25 = arith.constant 0 : index
    %c0_26 = arith.constant 0 : index
    %33 = vector.load %arg10[%c0_25, %c0_26] : memref<128x128xf32, #tpu.memory_space<vmem>>, vector<128x128xf32>
    tpu.vector_store %arg10[%c0_25, %c0_26], %32 {strides = array<i32>} : memref<128x128xf32, #tpu.memory_space<vmem>>, vector<128x128xf32>,
    %c0_27 = arith.constant 0 : index
    %c0_28 = arith.constant 0 : index
    %34 = vector.load %arg11[%c0_27, %c0_28] : memref<128x128xf32, #tpu.memory_space<vmem>>, vector<128x128xf32>
    %35 = arith.addf %34, %14 : vector<128x128xf32>
    %c0_29 = arith.constant 0 : index
    %c0_30 = arith.constant 0 : index
    %36 = vector.load %arg11[%c0_29, %c0_30] : memref<128x128xf32, #tpu.memory_space<vmem>>, vector<128x128xf32>
    tpu.vector_store %arg11[%c0_29, %c0_30], %35 {strides = array<i32>} : memref<128x128xf32, #tpu.memory_space<vmem>>, vector<128x128xf32>,
    %c0_i32_31 = arith.constant 0 : i32
    %37 = arith.cmpi eq, %arg1, %c0_i32_31 : i32
    %38 = arith.extui %37 : i1 to i32
    %c0_i32_32 = arith.constant 0 : i32
    %39 = arith.cmpi ne, %38, %c0_i32_32 : i32
    scf.if %39 {
      %40 = arith.mulf %3, %4 : vector<128x128xf32>
      %cst_33 = arith.constant dense<0.000000e+00> : vector<128xf32>
      %41 = vector.multi_reduction <add>, %40, %cst_33 [1] : vector<128x128xf32> to vector<128xf32>
      %42 = vector.shape_cast %41 : vector<128xf32> to vector<128x1xf32>
      %cst_34 = arith.constant 1.000000e+00 : f32
      %43 = vector.broadcast %cst_34 : f32 to vector<128x1xf32>
      %44 = arith.mulf %42, %43 : vector<128x1xf32>
      %c128_i32 = arith.constant 128 : i32
      %45 = arith.muli %arg0, %c128_i32 : i32
      %46 = tpu.iota {dimensions = array<i32: 0>} : vector<128x1xi32>
      %47 = vector.broadcast %45 : i32 to vector<128x1xi32>
      %48 = arith.addi %47, %46 : vector<128x1xi32>
      %c8_i32 = arith.constant 8 : i32
      %49 = vector.broadcast %c8_i32 : i32 to vector<128x1xi32>
      %50 = arith.cmpi slt, %48, %49 : vector<128x1xi32>
      %51 = arith.extui %50 : vector<128x1xi1> to vector<128x1xi32>
      %52 = arith.sitofp %51 : vector<128x1xi32> to vector<128x1xf32>
      %c0_35 = arith.constant 0 : index
      %c0_36 = arith.constant 0 : index
      %53 = vector.load %arg8[%c0_35, %c0_36] : memref<128x128xf32, #tpu.memory_space<vmem>>, vector<128x128xf32>
      %cst_37 = arith.constant dense<0.000000e+00> : vector<128xf32>
      %54 = vector.multi_reduction <add>, %53, %cst_37 [1] : vector<128x128xf32> to vector<128xf32>
      %55 = vector.shape_cast %54 : vector<128xf32> to vector<128x1xf32>
      %cst_38 = arith.constant 2.400000e+02 : f32
      %56 = vector.broadcast %cst_38 : f32 to vector<128x1xf32>
      %57 = arith.subf %55, %56 : vector<128x1xf32>
      %cst_39 = arith.constant 2.71828175 : f32
      %58 = vector.broadcast %cst_39 : f32 to vector<128x1xf32>
      %59 = arith.subf %57, %58 : vector<128x1xf32>
      %cst_40 = arith.constant 9.99999997E-7 : f32
      %60 = vector.broadcast %cst_40 : f32 to vector<128x1xf32>
      %61 = arith.maximumf %59, %60 : vector<128x1xf32>
      %c0_41 = arith.constant 0 : index
      %c0_42 = arith.constant 0 : index
      %62 = vector.load %arg9[%c0_41, %c0_42] : memref<128x128xf32, #tpu.memory_space<vmem>>, vector<128x128xf32>
      %cst_43 = arith.constant dense<0.000000e+00> : vector<128xf32>
      %63 = vector.multi_reduction <add>, %62, %cst_43 [1] : vector<128x128xf32> to vector<128xf32>
      %64 = vector.shape_cast %63 : vector<128xf32> to vector<128x1xf32>
      %cst_44 = arith.constant 2.400000e+02 : f32
      %65 = vector.broadcast %cst_44 : f32 to vector<128x1xf32>
      %66 = arith.subf %64, %65 : vector<128x1xf32>
      %cst_45 = arith.constant 2.71828175 : f32
      %67 = vector.broadcast %cst_45 : f32 to vector<128x1xf32>
      %68 = arith.subf %66, %67 : vector<128x1xf32>
      %cst_46 = arith.constant 9.99999997E-7 : f32
      %69 = vector.broadcast %cst_46 : f32 to vector<128x1xf32>
      %70 = arith.maximumf %68, %69 : vector<128x1xf32>
      %cst_47 = arith.constant 9.99999997E-7 : f32
      %71 = vector.broadcast %cst_47 : f32 to vector<128x1xf32>
      %72 = arith.addf %61, %71 : vector<128x1xf32>
      %73 = math.log %72 : vector<128x1xf32>
      %74 = arith.subf %73, %44 : vector<128x1xf32>
      %cst_48 = arith.constant 9.99999997E-7 : f32
      %75 = vector.broadcast %cst_48 : f32 to vector<128x1xf32>
      %76 = arith.addf %70, %75 : vector<128x1xf32>
      %77 = math.log %76 : vector<128x1xf32>
      %78 = arith.subf %77, %44 : vector<128x1xf32>
      %79 = arith.addf %74, %78 : vector<128x1xf32>
      %80 = arith.mulf %79, %52 : vector<128x1xf32>
      %81 = vector.shape_cast %80 : vector<128x1xf32> to vector<1x128x1xf32>
      %cst_49 = arith.constant dense<0.000000e+00> : vector<1xf32>
      %82 = vector.multi_reduction <add>, %81, %cst_49 [1, 2] : vector<1x128x1xf32> to vector<1xf32>
      %83 = vector.shape_cast %82 : vector<1xf32> to vector<1x1x1xf32>
      %84 = vector.extract %83[0, 0, 0] : f32 from vector<1x1x1xf32>
      %85 = vector.broadcast %84 : f32 to vector<1x8x128xf32>
      %c0_50 = arith.constant 0 : index
      %c0_51 = arith.constant 0 : index
      %c0_52 = arith.constant 0 : index
      %86 = vector.load %arg6[%c0_50, %c0_51, %c0_52] : memref<1x8x128xf32, #tpu.memory_space<vmem>>, vector<1x8x128xf32>
      tpu.vector_store %arg6[%c0_50, %c0_51, %c0_52], %85 {strides = array<i32>} : memref<1x8x128xf32, #tpu.memory_space<vmem>>, vector<1x8x128xf32>,
      %c0_53 = arith.constant 0 : index
      %c0_54 = arith.constant 0 : index
      %87 = vector.load %arg10[%c0_53, %c0_54] : memref<128x128xf32, #tpu.memory_space<vmem>>, vector<128x128xf32>
      %cst_55 = arith.constant dense<0.000000e+00> : vector<128xf32>
      %88 = vector.multi_reduction <add>, %87, %cst_55 [1] : vector<128x128xf32> to vector<128xf32>
      %89 = vector.shape_cast %88 : vector<128xf32> to vector<128x1xf32>
      %cst_56 = arith.constant 1.200000e+02 : f32
      %90 = vector.broadcast %cst_56 : f32 to vector<128x1xf32>
      %91 = arith.subf %89, %90 : vector<128x1xf32>
      %c0_57 = arith.constant 0 : index
      %c0_58 = arith.constant 0 : index
      %92 = vector.load %arg11[%c0_57, %c0_58] : memref<128x128xf32, #tpu.memory_space<vmem>>, vector<128x128xf32>
      %cst_59 = arith.constant dense<0.000000e+00> : vector<128xf32>
      %93 = vector.multi_reduction <add>, %92, %cst_59 [1] : vector<128x128xf32> to vector<128xf32>
      %94 = vector.shape_cast %93 : vector<128xf32> to vector<128x1xf32>
      %cst_60 = arith.constant 1.200000e+02 : f32
      %95 = vector.broadcast %cst_60 : f32 to vector<128x1xf32>
      %96 = arith.subf %94, %95 : vector<128x1xf32>
      %cst_61 = arith.constant 9.99999997E-7 : f32
      %97 = vector.broadcast %cst_61 : f32 to vector<128x1xf32>
      %98 = arith.addf %91, %97 : vector<128x1xf32>
      %99 = math.log %98 : vector<128x1xf32>
      %100 = arith.subf %99, %44 : vector<128x1xf32>
      %cst_62 = arith.constant 9.99999997E-7 : f32
      %101 = vector.broadcast %cst_62 : f32 to vector<128x1xf32>
      %102 = arith.addf %96, %101 : vector<128x1xf32>
      %103 = math.log %102 : vector<128x1xf32>
      %104 = arith.subf %103, %44 : vector<128x1xf32>
      %105 = arith.addf %100, %104 : vector<128x1xf32>
      %106 = arith.mulf %105, %52 : vector<128x1xf32>
      %107 = vector.shape_cast %106 : vector<128x1xf32> to vector<1x128x1xf32>
      %cst_63 = arith.constant dense<0.000000e+00> : vector<1xf32>
      %108 = vector.multi_reduction <add>, %107, %cst_63 [1, 2] : vector<1x128x1xf32> to vector<1xf32>
      %109 = vector.shape_cast %108 : vector<1xf32> to vector<1x1x1xf32>
      %110 = vector.extract %109[0, 0, 0] : f32 from vector<1x1x1xf32>
      %111 = vector.broadcast %110 : f32 to vector<1x8x128xf32>
      %c0_64 = arith.constant 0 : index
      %c0_65 = arith.constant 0 : index
      %c0_66 = arith.constant 0 : index
      %112 = vector.load %arg7[%c0_64, %c0_65, %c0_66] : memref<1x8x128xf32, #tpu.memory_space<vmem>>, vector<1x8x128xf32>
      tpu.vector_store %arg7[%c0_64, %c0_65, %c0_66], %111 {strides = array<i32>} : memref<1x8x128xf32, #tpu.memory_space<vmem>>, vector<1x8x128xf32>,
    } else {
    }
    return
  }
  func.func @transform_0(%arg0: i32, %arg1: i32) -> (i32, i32) {
    %c0_i32 = arith.constant 0 : i32
    %c0_i32_0 = arith.constant 0 : i32
    return %arg0, %c0_i32 : i32, i32
  }
  func.func @transform_1(%arg0: i32, %arg1: i32) -> (i32, i32) {
    %c0_i32 = arith.constant 0 : i32
    %c0_i32_0 = arith.constant 0 : i32
    return %arg0, %c0_i32 : i32, i32
  }
  func.func @transform_2(%arg0: i32, %arg1: i32) -> (i32, i32) {
    %c0_i32 = arith.constant 0 : i32
    %c0_i32_0 = arith.constant 0 : i32
    return %arg1, %c0_i32 : i32, i32
  }
  func.func @transform_3(%arg0: i32, %arg1: i32) -> (i32, i32) {
    %c0_i32 = arith.constant 0 : i32
    %c0_i32_0 = arith.constant 0 : i32
    return %arg1, %c0_i32 : i32, i32
  }
  func.func @transform_4(%arg0: i32, %arg1: i32) -> (i32, i32, i32) {
    %c0_i32 = arith.constant 0 : i32
    %c0_i32_0 = arith.constant 0 : i32
    %c0_i32_1 = arith.constant 0 : i32
    return %arg0, %c0_i32, %c0_i32_0 : i32, i32, i32
  }
  func.func @transform_5(%arg0: i32, %arg1: i32) -> (i32, i32, i32) {
    %c0_i32 = arith.constant 0 : i32
    %c0_i32_0 = arith.constant 0 : i32
    %c0_i32_1 = arith.constant 0 : i32
    return %arg0, %c0_i32, %c0_i32_0 : i32, i32, i32
  }
}

</mosaic_0001>

<llo_original>
// kernel: tpu_custom_call.1
$region0: #{tpu_custom_call.1}
  #allocation0 [shape = 'u32[]', space=smem, size = 0x4, offset = 0x4, fixed_abs, tag = 'smem constant byte address 0x4 - core index']
  #allocation1 [shape = 'u32[144,128]{1,0:T(1,128)}', space=vmem, size = 0x12000, scoped, tag = 'internal scratch']
  #allocation2 [shape = 'f32[128,128]{1,0:T(8,128)}', space=vmem, size = 0x10000, scoped, tag = 'scratch operand']
  #allocation3 [shape = 'f32[128,128]{1,0:T(8,128)}', space=vmem, size = 0x10000, scoped, tag = 'scratch operand']
  #allocation4 [shape = 'f32[128,128]{1,0:T(8,128)}', space=vmem, size = 0x10000, scoped, tag = 'scratch operand']
  #allocation5 [shape = 'f32[128,128]{1,0:T(8,128)}', space=vmem, size = 0x10000, scoped, tag = 'scratch operand']
  %s0 = inlined_call_operand.hbm [shape: f32[128,128], index: 0, kind: input, shape index: {}]
  %s1 = inlined_call_operand.hbm [shape: f32[128,128], index: 1, kind: input, shape index: {}]
  %s2 = inlined_call_operand.hbm [shape: f32[128,128], index: 2, kind: input, shape index: {}]
  %s3 = inlined_call_operand.hbm [shape: f32[128,128], index: 3, kind: input, shape index: {}]
  %s4 = inlined_call_operand.hbm [shape: f32[1,8,128], index: 4, kind: output, shape index: {0}]
  %s5 = inlined_call_operand.hbm [shape: f32[1,8,128], index: 5, kind: output, shape index: {1}]
  %6 = xla_tuple %s4, %s5
  %s7 = sld [smem:[#allocation0]]
  $region58: #{tpu_custom_call.1} parent=0
    _
  %s9 = ssub.s32 1, %s7
  %s10 = scalar_select 0, %s9, %s7
  $region1: #{tpu_custom_call.1} parent=0
    #allocation6 [shape = 'u8[65536]{0}', space=vmem, size = 0x10000, scoped, tag = 'input window, operand 0, single buffered']
    #allocation7 [shape = 's32[1]{0}', space=sflag, size = 0x4, scoped, tag = 'scoped memory for tpu_custom_call.1']
    #allocation8 [shape = 's32[1]{0}', space=sflag, size = 0x4, scoped, tag = 'scoped memory for tpu_custom_call.1']
    #allocation9 [shape = 'u8[65536]{0}', space=vmem, size = 0x10000, scoped, tag = 'input window, operand 1, single buffered']
    #allocation10 [shape = 's32[1]{0}', space=sflag, size = 0x4, scoped, tag = 'scoped memory for tpu_custom_call.1']
    #allocation11 [shape = 'u8[65536]{0}', space=vmem, size = 0x10000, scoped, tag = 'input window, operand 2, single buffered']
    #allocation12 [shape = 'u8[65536]{0}', space=vmem, size = 0x10000, scoped, tag = 'input window, operand 3, single buffered']
    #allocation13 [shape = 's32[1]{0}', space=sflag, size = 0x4, scoped, tag = 'scoped memory for tpu_custom_call.1']
    #allocation14 [shape = 'u8[4096]{0}', space=vmem, size = 0x1000, scoped, tag = 'output window, operand 0, single buffered']
    #allocation15 [shape = 'u8[4096]{0}', space=vmem, size = 0x1000, scoped, tag = 'output window, operand 1, single buffered']
    #allocation16 [shape = 's32[1]{0}', space=sflag, size = 0x4, scoped, tag = 'scoped memory for tpu_custom_call.1']
    %11 = vsyncpa [#allocation7], 0
    %12 = vsyncpa [#allocation10], 0
    %13 = vsyncpa [#allocation13], 0
    %14 = vsyncpa [#allocation8], 0
    %15 = vsyncpa [#allocation16], 0
    // Predicated region
    $region2: #{tpu_custom_call.1} parent=1 // pred_check
      _
    $region3: #{tpu_custom_call.1} parent=1 // pred_check_branch
      %17 = sbr.rel (0) target = $region5
    $region4: #{tpu_custom_call.1} parent=1 // pred_region
      %s19 = ssub.s32 2048, 2048
      %20 = vsyncadd [#allocation7], %s19
      %s21 = sshll.u32 [#allocation6], 4
      %s22 = int_to_ptr.vmem [resolvable:$true] %s21
      %27 = dma.hbm_to_vmem [thread:$0]  %s0, 2048, %s22, [#allocation7], 128, 128, 8
    $region5: #{tpu_custom_call.1} parent=1 // pred_fallthru
      _
    // Predicated region
    $region6: #{tpu_custom_call.1} parent=1 // pred_check
      _
    $region7: #{tpu_custom_call.1} parent=1 // pred_check_branch
      %29 = sbr.rel (0) target = $region9
    $region8: #{tpu_custom_call.1} parent=1 // pred_region
      %s31 = ssub.s32 2048, 2048
      %32 = vsyncadd [#allocation10], %s31
      %s33 = sshll.u32 [#allocation9], 4
      %s34 = int_to_ptr.vmem [resolvable:$true] %s33
      %39 = dma.hbm_to_vmem [thread:$0]  %s1, 2048, %s34, [#allocation10], 128, 128, 8
    $region9: #{tpu_custom_call.1} parent=1 // pred_fallthru
      _
    // Predicated region
    $region10: #{tpu_custom_call.1} parent=1 // pred_check
      _
    $region11: #{tpu_custom_call.1} parent=1 // pred_check_branch
      %41 = sbr.rel (0) target = $region13
    $region12: #{tpu_custom_call.1} parent=1 // pred_region
      %s43 = ssub.s32 2048, 2048
      %44 = vsyncadd [#allocation10], %s43
      %s45 = sshll.u32 [#allocation11], 4
      %s46 = int_to_ptr.vmem [resolvable:$true] %s45
      %51 = dma.hbm_to_vmem [thread:$0]  %s2, 2048, %s46, [#allocation10], 128, 128, 8
    $region13: #{tpu_custom_call.1} parent=1 // pred_fallthru
      _
    // Predicated region
    $region14: #{tpu_custom_call.1} parent=1 // pred_check
      _
    $region15: #{tpu_custom_call.1} parent=1 // pred_check_branch
      %53 = sbr.rel (0) target = $region17
    $region16: #{tpu_custom_call.1} parent=1 // pred_region
      %s55 = ssub.s32 2048, 2048
      %56 = vsyncadd [#allocation13], %s55
      %s57 = sshll.u32 [#allocation12], 4
      %s58 = int_to_ptr.vmem [resolvable:$true] %s57
      %63 = dma.hbm_to_vmem [thread:$0]  %s3, 2048, %s58, [#allocation13], 128, 128, 8
    $region17: #{tpu_custom_call.1} parent=1 // pred_fallthru
      _
    // Predicated region
    $region18: #{tpu_custom_call.1} parent=1 // pred_check
      _
    $region19: #{tpu_custom_call.1} parent=1 // pred_check_branch
      %65 = sbr.rel (0) target = $region21
    $region20: #{tpu_custom_call.1} parent=1 // pred_region
      %66 = dma.done [#allocation7], 2048
    $region21: #{tpu_custom_call.1} parent=1 // pred_fallthru
      _
    // Predicated region
    $region22: #{tpu_custom_call.1} parent=1 // pred_check
      _
    $region23: #{tpu_custom_call.1} parent=1 // pred_check_branch
      %68 = sbr.rel (0) target = $region25
    $region24: #{tpu_custom_call.1} parent=1 // pred_region
      %69 = dma.done [#allocation10], 2048
    $region25: #{tpu_custom_call.1} parent=1 // pred_fallthru
      _
    // Predicated region
    $region26: #{tpu_custom_call.1} parent=1 // pred_check
      _
    $region27: #{tpu_custom_call.1} parent=1 // pred_check_branch
      %71 = sbr.rel (0) target = $region29
    $region28: #{tpu_custom_call.1} parent=1 // pred_region
      %72 = dma.done [#allocation10], 2048
    $region29: #{tpu_custom_call.1} parent=1 // pred_fallthru
      _
    // Predicated region
    $region30: #{tpu_custom_call.1} parent=1 // pred_check
      _
    $region31: #{tpu_custom_call.1} parent=1 // pred_check_branch
      %74 = sbr.rel (0) target = $region33
    $region32: #{tpu_custom_call.1} parent=1 // pred_region
      %75 = dma.done [#allocation13], 2048
    $region33: #{tpu_custom_call.1} parent=1 // pred_fallthru
      _
    %p76 = scmp.eq.s32.totalorder 0, 0
    // Predicated region
    $region34: #{tpu_custom_call.1} parent=1 // pred_check
      %p77 = pneg %p76
    $region35: #{tpu_custom_call.1} parent=1 // pred_check_branch
      %79 = sbr.rel (%p77) target = $region37
    $region36: #{tpu_custom_call.1} parent=1 // pred_region
      %80 = vst [vmem:[#allocation2] sm:$0xff] 0.0
      %81 = vst [vmem:[#allocation2 + $0x8] sm:$0xff] 0.0
      %82 = vst [vmem:[#allocation2 + $0x10] sm:$0xff] 0.0
      %83 = vst [vmem:[#allocation2 + $0x18] sm:$0xff] 0.0
      %84 = vst [vmem:[#allocation2 + $0x20] sm:$0xff] 0.0
      %85 = vst [vmem:[#allocation2 + $0x28] sm:$0xff] 0.0
      %86 = vst [vmem:[#allocation2 + $0x30] sm:$0xff] 0.0
      %87 = vst [vmem:[#allocation2 + $0x38] sm:$0xff] 0.0
      %88 = vst [vmem:[#allocation2 + $0x40] sm:$0xff] 0.0
      %89 = vst [vmem:[#allocation2 + $0x48] sm:$0xff] 0.0
      %90 = vst [vmem:[#allocation2 + $0x50] sm:$0xff] 0.0
      %91 = vst [vmem:[#allocation2 + $0x58] sm:$0xff] 0.0
      %92 = vst [vmem:[#allocation2 + $0x60] sm:$0xff] 0.0
      %93 = vst [vmem:[#allocation2 + $0x68] sm:$0xff] 0.0
      %94 = vst [vmem:[#allocation2 + $0x70] sm:$0xff] 0.0
      %95 = vst [vmem:[#allocation2 + $0x78] sm:$0xff] 0.0
      %96 = vst [vmem:[#allocation3] sm:$0xff] 0.0
      %97 = vst [vmem:[#allocation3 + $0x8] sm:$0xff] 0.0
      %98 = vst [vmem:[#allocation3 + $0x10] sm:$0xff] 0.0
      %99 = vst [vmem:[#allocation3 + $0x18] sm:$0xff] 0.0
      %100 = vst [vmem:[#allocation3 + $0x20] sm:$0xff] 0.0
      %101 = vst [vmem:[#allocation3 + $0x28] sm:$0xff] 0.0
      %102 = vst [vmem:[#allocation3 + $0x30] sm:$0xff] 0.0
      %103 = vst [vmem:[#allocation3 + $0x38] sm:$0xff] 0.0
      %104 = vst [vmem:[#allocation3 + $0x40] sm:$0xff] 0.0
      %105 = vst [vmem:[#allocation3 + $0x48] sm:$0xff] 0.0
      %106 = vst [vmem:[#allocation3 + $0x50] sm:$0xff] 0.0
      %107 = vst [vmem:[#allocation3 + $0x58] sm:$0xff] 0.0
      %108 = vst [vmem:[#allocation3 + $0x60] sm:$0xff] 0.0
      %109 = vst [vmem:[#allocation3 + $0x68] sm:$0xff] 0.0
      %110 = vst [vmem:[#allocation3 + $0x70] sm:$0xff] 0.0
      %111 = vst [vmem:[#allocation3 + $0x78] sm:$0xff] 0.0
      %112 = vst [vmem:[#allocation4] sm:$0xff] 0.0
      %113 = vst [vmem:[#allocation4 + $0x8] sm:$0xff] 0.0
      %114 = vst [vmem:[#allocation4 + $0x10] sm:$0xff] 0.0
      %115 = vst [vmem:[#allocation4 + $0x18] sm:$0xff] 0.0
      %116 = vst [vmem:[#allocation4 + $0x20] sm:$0xff] 0.0
      %117 = vst [vmem:[#allocation4 + $0x28] sm:$0xff] 0.0
      %118 = vst [vmem:[#allocation4 + $0x30] sm:$0xff] 0.0
      %119 = vst [vmem:[#allocation4 + $0x38] sm:$0xff] 0.0
      %120 = vst [vmem:[#allocation4 + $0x40] sm:$0xff] 0.0
      %121 = vst [vmem:[#allocation4 + $0x48] sm:$0xff] 0.0
      %122 = vst [vmem:[#allocation4 + $0x50] sm:$0xff] 0.0
      %123 = vst [vmem:[#allocation4 + $0x58] sm:$0xff] 0.0
      %124 = vst [vmem:[#allocation4 + $0x60] sm:$0xff] 0.0
      %125 = vst [vmem:[#allocation4 + $0x68] sm:$0xff] 0.0
      %126 = vst [vmem:[#allocation4 + $0x70] sm:$0xff] 0.0
      %127 = vst [vmem:[#allocation4 + $0x78] sm:$0xff] 0.0
      %128 = vst [vmem:[#allocation5] sm:$0xff] 0.0
      %129 = vst [vmem:[#allocation5 + $0x8] sm:$0xff] 0.0
      %130 = vst [vmem:[#allocation5 + $0x10] sm:$0xff] 0.0
      %131 = vst [vmem:[#allocation5 + $0x18] sm:$0xff] 0.0
      %132 = vst [vmem:[#allocation5 + $0x20] sm:$0xff] 0.0
      %133 = vst [vmem:[#allocation5 + $0x28] sm:$0xff] 0.0
      %134 = vst [vmem:[#allocation5 + $0x30] sm:$0xff] 0.0
      %135 = vst [vmem:[#allocation5 + $0x38] sm:$0xff] 0.0
      %136 = vst [vmem:[#allocation5 + $0x40] sm:$0xff] 0.0
      %137 = vst [vmem:[#allocation5 + $0x48] sm:$0xff] 0.0
      %138 = vst [vmem:[#allocation5 + $0x50] sm:$0xff] 0.0
      %139 = vst [vmem:[#allocation5 + $0x58] sm:$0xff] 0.0
      %140 = vst [vmem:[#allocation5 + $0x60] sm:$0xff] 0.0
      %141 = vst [vmem:[#allocation5 + $0x68] sm:$0xff] 0.0
      %142 = vst [vmem:[#allocation5 + $0x70] sm:$0xff] 0.0
      %143 = vst [vmem:[#allocation5 + $0x78] sm:$0xff] 0.0
    $region37: #{tpu_custom_call.1} parent=1 // pred_fallthru
      _
    %v144 = vld [vmem:[#allocation6] sm:$0xff]
    %v145 = vld [vmem:[#allocation6 + $0x8] sm:$0xff]
    %v146 = vld [vmem:[#allocation6 + $0x10] sm:$0xff]
    %v147 = vld [vmem:[#allocation6 + $0x18] sm:$0xff]
    %v148 = vld [vmem:[#allocation6 + $0x20] sm:$0xff]
    %v149 = vld [vmem:[#allocation6 + $0x28] sm:$0xff]
    %v150 = vld [vmem:[#allocation6 + $0x30] sm:$0xff]
    %v151 = vld [vmem:[#allocation6 + $0x38] sm:$0xff]
    %v152 = vld [vmem:[#allocation6 + $0x40] sm:$0xff]
    %v153 = vld [vmem:[#allocation6 + $0x48] sm:$0xff]
    %v154 = vld [vmem:[#allocation6 + $0x50] sm:$0xff]
    %v155 = vld [vmem:[#allocation6 + $0x58] sm:$0xff]
    %v156 = vld [vmem:[#allocation6 + $0x60] sm:$0xff]
    %v157 = vld [vmem:[#allocation6 + $0x68] sm:$0xff]
    %v158 = vld [vmem:[#allocation6 + $0x70] sm:$0xff]
    %v159 = vld [vmem:[#allocation6 + $0x78] sm:$0xff]
    %v160 = vld [vmem:[#allocation9] sm:$0xff]
    %v161 = vld [vmem:[#allocation9 + $0x8] sm:$0xff]
    %v162 = vld [vmem:[#allocation9 + $0x10] sm:$0xff]
    %v163 = vld [vmem:[#allocation9 + $0x18] sm:$0xff]
    %v164 = vld [vmem:[#allocation9 + $0x20] sm:$0xff]
    %v165 = vld [vmem:[#allocation9 + $0x28] sm:$0xff]
    %v166 = vld [vmem:[#allocation9 + $0x30] sm:$0xff]
    %v167 = vld [vmem:[#allocation9 + $0x38] sm:$0xff]
    %v168 = vld [vmem:[#allocation9 + $0x40] sm:$0xff]
    %v169 = vld [vmem:[#allocation9 + $0x48] sm:$0xff]
    %v170 = vld [vmem:[#allocation9 + $0x50] sm:$0xff]
    %v171 = vld [vmem:[#allocation9 + $0x58] sm:$0xff]
    %v172 = vld [vmem:[#allocation9 + $0x60] sm:$0xff]
    %v173 = vld [vmem:[#allocation9 + $0x68] sm:$0xff]
    %v174 = vld [vmem:[#allocation9 + $0x70] sm:$0xff]
    %v175 = vld [vmem:[#allocation9 + $0x78] sm:$0xff]
    %v176 = vld [vmem:[#allocation11] sm:$0xff]
    %v177 = vld [vmem:[#allocation11 + $0x8] sm:$0xff]
    %v178 = vld [vmem:[#allocation11 + $0x10] sm:$0xff]
    %v179 = vld [vmem:[#allocation11 + $0x18] sm:$0xff]
    %v180 = vld [vmem:[#allocation11 + $0x20] sm:$0xff]
    %v181 = vld [vmem:[#allocation11 + $0x28] sm:$0xff]
    %v182 = vld [vmem:[#allocation11 + $0x30] sm:$0xff]
    %v183 = vld [vmem:[#allocation11 + $0x38] sm:$0xff]
    %v184 = vld [vmem:[#allocation11 + $0x40] sm:$0xff]
    %v185 = vld [vmem:[#allocation11 + $0x48] sm:$0xff]
    %v186 = vld [vmem:[#allocation11 + $0x50] sm:$0xff]
    %v187 = vld [vmem:[#allocation11 + $0x58] sm:$0xff]
    %v188 = vld [vmem:[#allocation11 + $0x60] sm:$0xff]
    %v189 = vld [vmem:[#allocation11 + $0x68] sm:$0xff]
    %v190 = vld [vmem:[#allocation11 + $0x70] sm:$0xff]
    %v191 = vld [vmem:[#allocation11 + $0x78] sm:$0xff]
    %v192 = vld [vmem:[#allocation12] sm:$0xff]
    %v193 = vld [vmem:[#allocation12 + $0x8] sm:$0xff]
    %v194 = vld [vmem:[#allocation12 + $0x10] sm:$0xff]
    %v195 = vld [vmem:[#allocation12 + $0x18] sm:$0xff]
    %v196 = vld [vmem:[#allocation12 + $0x20] sm:$0xff]
    %v197 = vld [vmem:[#allocation12 + $0x28] sm:$0xff]
    %v198 = vld [vmem:[#allocation12 + $0x30] sm:$0xff]
    %v199 = vld [vmem:[#allocation12 + $0x38] sm:$0xff]
    %v200 = vld [vmem:[#allocation12 + $0x40] sm:$0xff]
    %v201 = vld [vmem:[#allocation12 + $0x48] sm:$0xff]
    %v202 = vld [vmem:[#allocation12 + $0x50] sm:$0xff]
    %v203 = vld [vmem:[#allocation12 + $0x58] sm:$0xff]
    %v204 = vld [vmem:[#allocation12 + $0x60] sm:$0xff]
    %v205 = vld [vmem:[#allocation12 + $0x68] sm:$0xff]
    %v206 = vld [vmem:[#allocation12 + $0x70] sm:$0xff]
    %v207 = vld [vmem:[#allocation12 + $0x78] sm:$0xff]
    %208 = vmatprep.subr.mxu0 0.0
    %209 = vmatpush1.xpose.msra.mxu0 %v192
    %210 = vmatprep.subr.mxu0 0.0
    %211 = vmatpush1.xpose.msra.mxu0 %v193
    %212 = vmatprep.subr.mxu0 0.0
    %213 = vmatpush1.xpose.msra.mxu0 %v194
    %214 = vmatprep.subr.mxu0 0.0
    %215 = vmatpush1.xpose.msra.mxu0 %v195
    %216 = vmatprep.subr.mxu0 0.0
    %217 = vmatpush1.xpose.msra.mxu0 %v196
    %218 = vmatprep.subr.mxu0 0.0
    %219 = vmatpush1.xpose.msra.mxu0 %v197
    %220 = vmatprep.subr.mxu0 0.0
    %221 = vmatpush1.xpose.msra.mxu0 %v198
    %222 = vmatprep.subr.mxu0 0.0
    %223 = vmatpush1.xpose.msra.mxu0 %v199
    %224 = vmatprep.subr.mxu0 0.0
    %225 = vmatpush1.xpose.msra.mxu0 %v200
    %226 = vmatprep.subr.mxu0 0.0
    %227 = vmatpush1.xpose.msra.mxu0 %v201
    %228 = vmatprep.subr.mxu0 0.0
    %229 = vmatpush1.xpose.msra.mxu0 %v202
    %230 = vmatprep.subr.mxu0 0.0
    %231 = vmatpush1.xpose.msra.mxu0 %v203
    %232 = vmatprep.subr.mxu0 0.0
    %233 = vmatpush1.xpose.msra.mxu0 %v204
    %234 = vmatprep.subr.mxu0 0.0
    %235 = vmatpush1.xpose.msra.mxu0 %v205
    %236 = vmatprep.subr.mxu0 0.0
    %237 = vmatpush1.xpose.msra.mxu0 %v206
    %238 = vmatprep.subr.mxu0 0.0
    %239 = vmatpush1.xpose.msra.mxu0 %v207
    %240 = vmatprep.subr.mxu0 0.0
    %241 = vmatpush1.xpose.msra.mxu0 0.0
    %242 = vmatprep.subr.mxu0 0.0
    %243 = vmatpush1.xpose.msra.mxu0 0.0
    %244 = vmatprep.subr.mxu0 0.0
    %245 = vmatpush1.xpose.msra.mxu0 0.0
    %246 = vmatprep.subr.mxu0 0.0
    %247 = vmatpush1.xpose.msra.mxu0 0.0
    %248 = vmatprep.subr.mxu0 0.0
    %249 = vmatpush1.xpose.msra.mxu0 0.0
    %250 = vmatprep.subr.mxu0 0.0
    %251 = vmatpush1.xpose.msra.mxu0 0.0
    %252 = vmatprep.subr.mxu0 0.0
    %253 = vmatpush1.xpose.msra.mxu0 0.0
    %254 = vmatprep.subr.mxu0 0.0
    %255 = vmatpush1.xpose.msra.mxu0 0.0
    %256 = vmatprep.subr.mxu0 0.0
    %257 = vmatpush1.xpose.msra.mxu0 0.0
    %258 = vmatprep.subr.mxu0 0.0
    %259 = vmatpush1.xpose.msra.mxu0 0.0
    %260 = vmatprep.subr.mxu0 0.0
    %261 = vmatpush1.xpose.msra.mxu0 0.0
    %262 = vmatprep.subr.mxu0 0.0
    %263 = vmatpush1.xpose.msra.mxu0 0.0
    %264 = vmatprep.subr.mxu0 0.0
    %265 = vmatpush1.xpose.msra.mxu0 0.0
    %266 = vmatprep.subr.mxu0 0.0
    %267 = vmatpush1.xpose.msra.mxu0 0.0
    %268 = vmatprep.subr.mxu0 0.0
    %269 = vmatpush1.xpose.msra.mxu0 0.0
    %270 = vmatprep.subr.mxu0 0.0
    %271 = vmatpush1.xpose.msra.mxu0 0.0
    %272 = vmatprep.mubr.f32.mxu0 0.0
    %273 = vmatmul.mubr.f32.gmra.mrb[0].mxu0 %v144
    %v274 = vpop.f32.mrb[0].mxu0
    %v275 = vadd.f32 0.0, %v274
    %v276 = vpop.f32.mrb[0].mxu0
    %277 = vmatprep.mubr.f32.mxu0 0.0
    %278 = vmatmul.mubr.f32.gmra.mrb[0].mxu0 %v145
    %v279 = vpop.f32.mrb[0].mxu0
    %v280 = vadd.f32 0.0, %v279
    %v281 = vpop.f32.mrb[0].mxu0
    %282 = vmatprep.mubr.f32.mxu0 0.0
    %283 = vmatmul.mubr.f32.gmra.mrb[0].mxu0 %v146
    %v284 = vpop.f32.mrb[0].mxu0
    %v285 = vadd.f32 0.0, %v284
    %v286 = vpop.f32.mrb[0].mxu0
    %287 = vmatprep.mubr.f32.mxu0 0.0
    %288 = vmatmul.mubr.f32.gmra.mrb[0].mxu0 %v147
    %v289 = vpop.f32.mrb[0].mxu0
    %v290 = vadd.f32 0.0, %v289
    %v291 = vpop.f32.mrb[0].mxu0
    %292 = vmatprep.mubr.f32.mxu0 0.0
    %293 = vmatmul.mubr.f32.gmra.mrb[0].mxu0 %v148
    %v294 = vpop.f32.mrb[0].mxu0
    %v295 = vadd.f32 0.0, %v294
    %v296 = vpop.f32.mrb[0].mxu0
    %297 = vmatprep.mubr.f32.mxu0 0.0
    %298 = vmatmul.mubr.f32.gmra.mrb[0].mxu0 %v149
    %v299 = vpop.f32.mrb[0].mxu0
    %v300 = vadd.f32 0.0, %v299
    %v301 = vpop.f32.mrb[0].mxu0
    %302 = vmatprep.mubr.f32.mxu0 0.0
    %303 = vmatmul.mubr.f32.gmra.mrb[0].mxu0 %v150
    %v304 = vpop.f32.mrb[0].mxu0
    %v305 = vadd.f32 0.0, %v304
    %v306 = vpop.f32.mrb[0].mxu0
    %307 = vmatprep.mubr.f32.mxu0 0.0
    %308 = vmatmul.mubr.f32.gmra.mrb[0].mxu0 %v151
    %v309 = vpop.f32.mrb[0].mxu0
    %v310 = vadd.f32 0.0, %v309
    %v311 = vpop.f32.mrb[0].mxu0
    %312 = vmatprep.mubr.f32.mxu0 0.0
    %313 = vmatmul.mubr.f32.gmra.mrb[0].mxu0 %v152
    %v314 = vpop.f32.mrb[0].mxu0
    %v315 = vadd.f32 0.0, %v314
    %v316 = vpop.f32.mrb[0].mxu0
    %317 = vmatprep.mubr.f32.mxu0 0.0
    %318 = vmatmul.mubr.f32.gmra.mrb[0].mxu0 %v153
    %v319 = vpop.f32.mrb[0].mxu0
    %v320 = vadd.f32 0.0, %v319
    %v321 = vpop.f32.mrb[0].mxu0
    %322 = vmatprep.mubr.f32.mxu0 0.0
    %323 = vmatmul.mubr.f32.gmra.mrb[0].mxu0 %v154
    %v324 = vpop.f32.mrb[0].mxu0
    %v325 = vadd.f32 0.0, %v324
    %v326 = vpop.f32.mrb[0].mxu0
    %327 = vmatprep.mubr.f32.mxu0 0.0
    %328 = vmatmul.mubr.f32.gmra.mrb[0].mxu0 %v155
    %v329 = vpop.f32.mrb[0].mxu0
    %v330 = vadd.f32 0.0, %v329
    %v331 = vpop.f32.mrb[0].mxu0
    %332 = vmatprep.mubr.f32.mxu0 0.0
    %333 = vmatmul.mubr.f32.gmra.mrb[0].mxu0 %v156
    %v334 = vpop.f32.mrb[0].mxu0
    %v335 = vadd.f32 0.0, %v334
    %v336 = vpop.f32.mrb[0].mxu0
    %337 = vmatprep.mubr.f32.mxu0 0.0
    %338 = vmatmul.mubr.f32.gmra.mrb[0].mxu0 %v157
    %v339 = vpop.f32.mrb[0].mxu0
    %v340 = vadd.f32 0.0, %v339
    %v341 = vpop.f32.mrb[0].mxu0
    %342 = vmatprep.mubr.f32.mxu0 0.0
    %343 = vmatmul.mubr.f32.gmra.mrb[0].mxu0 %v158
    %v344 = vpop.f32.mrb[0].mxu0
    %v345 = vadd.f32 0.0, %v344
    %v346 = vpop.f32.mrb[0].mxu0
    %347 = vmatprep.mubr.f32.mxu0 0.0
    %348 = vmatmul.mubr.f32.gmra.mrb[0].mxu0 %v159
    %v349 = vpop.f32.mrb[0].mxu0
    %v350 = vadd.f32 0.0, %v349
    %v351 = vpop.f32.mrb[0].mxu0
    %352 = vdwg.mxu0
    %v353 = vmul.f32 %v275, 1.442695
    %v354 = vpow.pop %v353
    %v355 = vmul.f32 %v280, 1.442695
    %v356 = vpow.pop %v355
    %v357 = vmul.f32 %v285, 1.442695
    %v358 = vpow.pop %v357
    %v359 = vmul.f32 %v290, 1.442695
    %v360 = vpow.pop %v359
    %v361 = vmul.f32 %v295, 1.442695
    %v362 = vpow.pop %v361
    %v363 = vmul.f32 %v300, 1.442695
    %v364 = vpow.pop %v363
    %v365 = vmul.f32 %v305, 1.442695
    %v366 = vpow.pop %v365
    %v367 = vmul.f32 %v310, 1.442695
    %v368 = vpow.pop %v367
    %v369 = vmul.f32 %v315, 1.442695
    %v370 = vpow.pop %v369
    %v371 = vmul.f32 %v320, 1.442695
    %v372 = vpow.pop %v371
    %v373 = vmul.f32 %v325, 1.442695
    %v374 = vpow.pop %v373
    %v375 = vmul.f32 %v330, 1.442695
    %v376 = vpow.pop %v375
    %v377 = vmul.f32 %v335, 1.442695
    %v378 = vpow.pop %v377
    %v379 = vmul.f32 %v340, 1.442695
    %v380 = vpow.pop %v379
    %v381 = vmul.f32 %v345, 1.442695
    %v382 = vpow.pop %v381
    %v383 = vmul.f32 %v350, 1.442695
    %v384 = vpow.pop %v383
    %385 = vmatprep.subr.mxu0 0.0
    %386 = vmatpush1.xpose.msra.mxu0 %v176
    %387 = vmatprep.subr.mxu0 0.0
    %388 = vmatpush1.xpose.msra.mxu0 %v177
    %389 = vmatprep.subr.mxu0 0.0
    %390 = vmatpush1.xpose.msra.mxu0 %v178
    %391 = vmatprep.subr.mxu0 0.0
    %392 = vmatpush1.xpose.msra.mxu0 %v179
    %393 = vmatprep.subr.mxu0 0.0
    %394 = vmatpush1.xpose.msra.mxu0 %v180
    %395 = vmatprep.subr.mxu0 0.0
    %396 = vmatpush1.xpose.msra.mxu0 %v181
    %397 = vmatprep.subr.mxu0 0.0
    %398 = vmatpush1.xpose.msra.mxu0 %v182
    %399 = vmatprep.subr.mxu0 0.0
    %400 = vmatpush1.xpose.msra.mxu0 %v183
    %401 = vmatprep.subr.mxu0 0.0
    %402 = vmatpush1.xpose.msra.mxu0 %v184
    %403 = vmatprep.subr.mxu0 0.0
    %404 = vmatpush1.xpose.msra.mxu0 %v185
    %405 = vmatprep.subr.mxu0 0.0
    %406 = vmatpush1.xpose.msra.mxu0 %v186
    %407 = vmatprep.subr.mxu0 0.0
    %408 = vmatpush1.xpose.msra.mxu0 %v187
    %409 = vmatprep.subr.mxu0 0.0
    %410 = vmatpush1.xpose.msra.mxu0 %v188
    %411 = vmatprep.subr.mxu0 0.0
    %412 = vmatpush1.xpose.msra.mxu0 %v189
    %413 = vmatprep.subr.mxu0 0.0
    %414 = vmatpush1.xpose.msra.mxu0 %v190
    %415 = vmatprep.subr.mxu0 0.0
    %416 = vmatpush1.xpose.msra.mxu0 %v191
    %417 = vmatprep.subr.mxu0 0.0
    %418 = vmatpush1.xpose.msra.mxu0 0.0
    %419 = vmatprep.subr.mxu0 0.0
    %420 = vmatpush1.xpose.msra.mxu0 0.0
    %421 = vmatprep.subr.mxu0 0.0
    %422 = vmatpush1.xpose.msra.mxu0 0.0
    %423 = vmatprep.subr.mxu0 0.0
    %424 = vmatpush1.xpose.msra.mxu0 0.0
    %425 = vmatprep.subr.mxu0 0.0
    %426 = vmatpush1.xpose.msra.mxu0 0.0
    %427 = vmatprep.subr.mxu0 0.0
    %428 = vmatpush1.xpose.msra.mxu0 0.0
    %429 = vmatprep.subr.mxu0 0.0
    %430 = vmatpush1.xpose.msra.mxu0 0.0
    %431 = vmatprep.subr.mxu0 0.0
    %432 = vmatpush1.xpose.msra.mxu0 0.0
    %433 = vmatprep.subr.mxu0 0.0
    %434 = vmatpush1.xpose.msra.mxu0 0.0
    %435 = vmatprep.subr.mxu0 0.0
    %436 = vmatpush1.xpose.msra.mxu0 0.0
    %437 = vmatprep.subr.mxu0 0.0
    %438 = vmatpush1.xpose.msra.mxu0 0.0
    %439 = vmatprep.subr.mxu0 0.0
    %440 = vmatpush1.xpose.msra.mxu0 0.0
    %441 = vmatprep.subr.mxu0 0.0
    %442 = vmatpush1.xpose.msra.mxu0 0.0
    %443 = vmatprep.subr.mxu0 0.0
    %444 = vmatpush1.xpose.msra.mxu0 0.0
    %445 = vmatprep.subr.mxu0 0.0
    %446 = vmatpush1.xpose.msra.mxu0 0.0
    %447 = vmatprep.subr.mxu0 0.0
    %448 = vmatpush1.xpose.msra.mxu0 0.0
    %449 = vmatprep.mubr.f32.mxu0 0.0
    %450 = vmatmul.mubr.f32.gmra.mrb[0].mxu0 %v160
    %v451 = vpop.f32.mrb[0].mxu0
    %v452 = vadd.f32 0.0, %v451
    %v453 = vpop.f32.mrb[0].mxu0
    %454 = vmatprep.mubr.f32.mxu0 0.0
    %455 = vmatmul.mubr.f32.gmra.mrb[0].mxu0 %v161
    %v456 = vpop.f32.mrb[0].mxu0
    %v457 = vadd.f32 0.0, %v456
    %v458 = vpop.f32.mrb[0].mxu0
    %459 = vmatprep.mubr.f32.mxu0 0.0
    %460 = vmatmul.mubr.f32.gmra.mrb[0].mxu0 %v162
    %v461 = vpop.f32.mrb[0].mxu0
    %v462 = vadd.f32 0.0, %v461
    %v463 = vpop.f32.mrb[0].mxu0
    %464 = vmatprep.mubr.f32.mxu0 0.0
    %465 = vmatmul.mubr.f32.gmra.mrb[0].mxu0 %v163
    %v466 = vpop.f32.mrb[0].mxu0
    %v467 = vadd.f32 0.0, %v466
    %v468 = vpop.f32.mrb[0].mxu0
    %469 = vmatprep.mubr.f32.mxu0 0.0
    %470 = vmatmul.mubr.f32.gmra.mrb[0].mxu0 %v164
    %v471 = vpop.f32.mrb[0].mxu0
    %v472 = vadd.f32 0.0, %v471
    %v473 = vpop.f32.mrb[0].mxu0
    %474 = vmatprep.mubr.f32.mxu0 0.0
    %475 = vmatmul.mubr.f32.gmra.mrb[0].mxu0 %v165
    %v476 = vpop.f32.mrb[0].mxu0
    %v477 = vadd.f32 0.0, %v476
    %v478 = vpop.f32.mrb[0].mxu0
    %479 = vmatprep.mubr.f32.mxu0 0.0
    %480 = vmatmul.mubr.f32.gmra.mrb[0].mxu0 %v166
    %v481 = vpop.f32.mrb[0].mxu0
    %v482 = vadd.f32 0.0, %v481
    %v483 = vpop.f32.mrb[0].mxu0
    %484 = vmatprep.mubr.f32.mxu0 0.0
    %485 = vmatmul.mubr.f32.gmra.mrb[0].mxu0 %v167
    %v486 = vpop.f32.mrb[0].mxu0
    %v487 = vadd.f32 0.0, %v486
    %v488 = vpop.f32.mrb[0].mxu0
    %489 = vmatprep.mubr.f32.mxu0 0.0
    %490 = vmatmul.mubr.f32.gmra.mrb[0].mxu0 %v168
    %v491 = vpop.f32.mrb[0].mxu0
    %v492 = vadd.f32 0.0, %v491
    %v493 = vpop.f32.mrb[0].mxu0
    %494 = vmatprep.mubr.f32.mxu0 0.0
    %495 = vmatmul.mubr.f32.gmra.mrb[0].mxu0 %v169
    %v496 = vpop.f32.mrb[0].mxu0
    %v497 = vadd.f32 0.0, %v496
    %v498 = vpop.f32.mrb[0].mxu0
    %499 = vmatprep.mubr.f32.mxu0 0.0
    %500 = vmatmul.mubr.f32.gmra.mrb[0].mxu0 %v170
    %v501 = vpop.f32.mrb[0].mxu0
    %v502 = vadd.f32 0.0, %v501
    %v503 = vpop.f32.mrb[0].mxu0
    %504 = vmatprep.mubr.f32.mxu0 0.0
    %505 = vmatmul.mubr.f32.gmra.mrb[0].mxu0 %v171
    %v506 = vpop.f32.mrb[0].mxu0
    %v507 = vadd.f32 0.0, %v506
    %v508 = vpop.f32.mrb[0].mxu0
    %509 = vmatprep.mubr.f32.mxu0 0.0
    %510 = vmatmul.mubr.f32.gmra.mrb[0].mxu0 %v172
    %v511 = vpop.f32.mrb[0].mxu0
    %v512 = vadd.f32 0.0, %v511
    %v513 = vpop.f32.mrb[0].mxu0
    %514 = vmatprep.mubr.f32.mxu0 0.0
    %515 = vmatmul.mubr.f32.gmra.mrb[0].mxu0 %v173
    %v516 = vpop.f32.mrb[0].mxu0
    %v517 = vadd.f32 0.0, %v516
    %v518 = vpop.f32.mrb[0].mxu0
    %519 = vmatprep.mubr.f32.mxu0 0.0
    %520 = vmatmul.mubr.f32.gmra.mrb[0].mxu0 %v174
    %v521 = vpop.f32.mrb[0].mxu0
    %v522 = vadd.f32 0.0, %v521
    %v523 = vpop.f32.mrb[0].mxu0
    %524 = vmatprep.mubr.f32.mxu0 0.0
    %525 = vmatmul.mubr.f32.gmra.mrb[0].mxu0 %v175
    %v526 = vpop.f32.mrb[0].mxu0
    %v527 = vadd.f32 0.0, %v526
    %v528 = vpop.f32.mrb[0].mxu0
    %529 = vdwg.mxu0
    %v530 = vmul.f32 %v452, 1.442695
    %v531 = vpow.pop %v530
    %v532 = vmul.f32 %v457, 1.442695
    %v533 = vpow.pop %v532
    %v534 = vmul.f32 %v462, 1.442695
    %v535 = vpow.pop %v534
    %v536 = vmul.f32 %v467, 1.442695
    %v537 = vpow.pop %v536
    %v538 = vmul.f32 %v472, 1.442695
    %v539 = vpow.pop %v538
    %v540 = vmul.f32 %v477, 1.442695
    %v541 = vpow.pop %v540
    %v542 = vmul.f32 %v482, 1.442695
    %v543 = vpow.pop %v542
    %v544 = vmul.f32 %v487, 1.442695
    %v545 = vpow.pop %v544
    %v546 = vmul.f32 %v492, 1.442695
    %v547 = vpow.pop %v546
    %v548 = vmul.f32 %v497, 1.442695
    %v549 = vpow.pop %v548
    %v550 = vmul.f32 %v502, 1.442695
    %v551 = vpow.pop %v550
    %v552 = vmul.f32 %v507, 1.442695
    %v553 = vpow.pop %v552
    %v554 = vmul.f32 %v512, 1.442695
    %v555 = vpow.pop %v554
    %v556 = vmul.f32 %v517, 1.442695
    %v557 = vpow.pop %v556
    %v558 = vmul.f32 %v522, 1.442695
    %v559 = vpow.pop %v558
    %v560 = vmul.f32 %v527, 1.442695
    %v561 = vpow.pop %v560
    %562 = vmatprep.subr.mxu0 0.0
    %563 = vmatpush1.xpose.msra.mxu0 %v176
    %564 = vmatprep.subr.mxu0 0.0
    %565 = vmatpush1.xpose.msra.mxu0 %v177
    %566 = vmatprep.subr.mxu0 0.0
    %567 = vmatpush1.xpose.msra.mxu0 %v178
    %568 = vmatprep.subr.mxu0 0.0
    %569 = vmatpush1.xpose.msra.mxu0 %v179
    %570 = vmatprep.subr.mxu0 0.0
    %571 = vmatpush1.xpose.msra.mxu0 %v180
    %572 = vmatprep.subr.mxu0 0.0
    %573 = vmatpush1.xpose.msra.mxu0 %v181
    %574 = vmatprep.subr.mxu0 0.0
    %575 = vmatpush1.xpose.msra.mxu0 %v182
    %576 = vmatprep.subr.mxu0 0.0
    %577 = vmatpush1.xpose.msra.mxu0 %v183
    %578 = vmatprep.subr.mxu0 0.0
    %579 = vmatpush1.xpose.msra.mxu0 %v184
    %580 = vmatprep.subr.mxu0 0.0
    %581 = vmatpush1.xpose.msra.mxu0 %v185
    %582 = vmatprep.subr.mxu0 0.0
    %583 = vmatpush1.xpose.msra.mxu0 %v186
    %584 = vmatprep.subr.mxu0 0.0
    %585 = vmatpush1.xpose.msra.mxu0 %v187
    %586 = vmatprep.subr.mxu0 0.0
    %587 = vmatpush1.xpose.msra.mxu0 %v188
    %588 = vmatprep.subr.mxu0 0.0
    %589 = vmatpush1.xpose.msra.mxu0 %v189
    %590 = vmatprep.subr.mxu0 0.0
    %591 = vmatpush1.xpose.msra.mxu0 %v190
    %592 = vmatprep.subr.mxu0 0.0
    %593 = vmatpush1.xpose.msra.mxu0 %v191
    %594 = vmatprep.subr.mxu0 0.0
    %595 = vmatpush1.xpose.msra.mxu0 0.0
    %596 = vmatprep.subr.mxu0 0.0
    %597 = vmatpush1.xpose.msra.mxu0 0.0
    %598 = vmatprep.subr.mxu0 0.0
    %599 = vmatpush1.xpose.msra.mxu0 0.0
    %600 = vmatprep.subr.mxu0 0.0
    %601 = vmatpush1.xpose.msra.mxu0 0.0
    %602 = vmatprep.subr.mxu0 0.0
    %603 = vmatpush1.xpose.msra.mxu0 0.0
    %604 = vmatprep.subr.mxu0 0.0
    %605 = vmatpush1.xpose.msra.mxu0 0.0
    %606 = vmatprep.subr.mxu0 0.0
    %607 = vmatpush1.xpose.msra.mxu0 0.0
    %608 = vmatprep.subr.mxu0 0.0
    %609 = vmatpush1.xpose.msra.mxu0 0.0
    %610 = vmatprep.subr.mxu0 0.0
    %611 = vmatpush1.xpose.msra.mxu0 0.0
    %612 = vmatprep.subr.mxu0 0.0
    %613 = vmatpush1.xpose.msra.mxu0 0.0
    %614 = vmatprep.subr.mxu0 0.0
    %615 = vmatpush1.xpose.msra.mxu0 0.0
    %616 = vmatprep.subr.mxu0 0.0
    %617 = vmatpush1.xpose.msra.mxu0 0.0
    %618 = vmatprep.subr.mxu0 0.0
    %619 = vmatpush1.xpose.msra.mxu0 0.0
    %620 = vmatprep.subr.mxu0 0.0
    %621 = vmatpush1.xpose.msra.mxu0 0.0
    %622 = vmatprep.subr.mxu0 0.0
    %623 = vmatpush1.xpose.msra.mxu0 0.0
    %624 = vmatprep.subr.mxu0 0.0
    %625 = vmatpush1.xpose.msra.mxu0 0.0
    %626 = vmatprep.mubr.f32.mxu0 0.0
    %627 = vmatmul.mubr.f32.gmra.mrb[0].mxu0 %v144
    %v628 = vpop.f32.mrb[0].mxu0
    %v629 = vadd.f32 0.0, %v628
    %v630 = vpop.f32.mrb[0].mxu0
    %631 = vmatprep.mubr.f32.mxu0 0.0
    %632 = vmatmul.mubr.f32.gmra.mrb[0].mxu0 %v145
    %v633 = vpop.f32.mrb[0].mxu0
    %v634 = vadd.f32 0.0, %v633
    %v635 = vpop.f32.mrb[0].mxu0
    %636 = vmatprep.mubr.f32.mxu0 0.0
    %637 = vmatmul.mubr.f32.gmra.mrb[0].mxu0 %v146
    %v638 = vpop.f32.mrb[0].mxu0
    %v639 = vadd.f32 0.0, %v638
    %v640 = vpop.f32.mrb[0].mxu0
    %641 = vmatprep.mubr.f32.mxu0 0.0
    %642 = vmatmul.mubr.f32.gmra.mrb[0].mxu0 %v147
    %v643 = vpop.f32.mrb[0].mxu0
    %v644 = vadd.f32 0.0, %v643
    %v645 = vpop.f32.mrb[0].mxu0
    %646 = vmatprep.mubr.f32.mxu0 0.0
    %647 = vmatmul.mubr.f32.gmra.mrb[0].mxu0 %v148
    %v648 = vpop.f32.mrb[0].mxu0
    %v649 = vadd.f32 0.0, %v648
    %v650 = vpop.f32.mrb[0].mxu0
    %651 = vmatprep.mubr.f32.mxu0 0.0
    %652 = vmatmul.mubr.f32.gmra.mrb[0].mxu0 %v149
    %v653 = vpop.f32.mrb[0].mxu0
    %v654 = vadd.f32 0.0, %v653
    %v655 = vpop.f32.mrb[0].mxu0
    %656 = vmatprep.mubr.f32.mxu0 0.0
    %657 = vmatmul.mubr.f32.gmra.mrb[0].mxu0 %v150
    %v658 = vpop.f32.mrb[0].mxu0
    %v659 = vadd.f32 0.0, %v658
    %v660 = vpop.f32.mrb[0].mxu0
    %661 = vmatprep.mubr.f32.mxu0 0.0
    %662 = vmatmul.mubr.f32.gmra.mrb[0].mxu0 %v151
    %v663 = vpop.f32.mrb[0].mxu0
    %v664 = vadd.f32 0.0, %v663
    %v665 = vpop.f32.mrb[0].mxu0
    %666 = vmatprep.mubr.f32.mxu0 0.0
    %667 = vmatmul.mubr.f32.gmra.mrb[0].mxu0 %v152
    %v668 = vpop.f32.mrb[0].mxu0
    %v669 = vadd.f32 0.0, %v668
    %v670 = vpop.f32.mrb[0].mxu0
    %671 = vmatprep.mubr.f32.mxu0 0.0
    %672 = vmatmul.mubr.f32.gmra.mrb[0].mxu0 %v153
    %v673 = vpop.f32.mrb[0].mxu0
    %v674 = vadd.f32 0.0, %v673
    %v675 = vpop.f32.mrb[0].mxu0
    %676 = vmatprep.mubr.f32.mxu0 0.0
    %677 = vmatmul.mubr.f32.gmra.mrb[0].mxu0 %v154
    %v678 = vpop.f32.mrb[0].mxu0
    %v679 = vadd.f32 0.0, %v678
    %v680 = vpop.f32.mrb[0].mxu0
    %681 = vmatprep.mubr.f32.mxu0 0.0
    %682 = vmatmul.mubr.f32.gmra.mrb[0].mxu0 %v155
    %v683 = vpop.f32.mrb[0].mxu0
    %v684 = vadd.f32 0.0, %v683
    %v685 = vpop.f32.mrb[0].mxu0
    %686 = vmatprep.mubr.f32.mxu0 0.0
    %687 = vmatmul.mubr.f32.gmra.mrb[0].mxu0 %v156
    %v688 = vpop.f32.mrb[0].mxu0
    %v689 = vadd.f32 0.0, %v688
    %v690 = vpop.f32.mrb[0].mxu0
    %691 = vmatprep.mubr.f32.mxu0 0.0
    %692 = vmatmul.mubr.f32.gmra.mrb[0].mxu0 %v157
    %v693 = vpop.f32.mrb[0].mxu0
    %v694 = vadd.f32 0.0, %v693
    %v695 = vpop.f32.mrb[0].mxu0
    %696 = vmatprep.mubr.f32.mxu0 0.0
    %697 = vmatmul.mubr.f32.gmra.mrb[0].mxu0 %v158
    %v698 = vpop.f32.mrb[0].mxu0
    %v699 = vadd.f32 0.0, %v698
    %v700 = vpop.f32.mrb[0].mxu0
    %701 = vmatprep.mubr.f32.mxu0 0.0
    %702 = vmatmul.mubr.f32.gmra.mrb[0].mxu0 %v159
    %v703 = vpop.f32.mrb[0].mxu0
    %v704 = vadd.f32 0.0, %v703
    %v705 = vpop.f32.mrb[0].mxu0
    %706 = vdwg.mxu0
    %v707 = vmul.f32 %v629, 1.442695
    %v708 = vpow.pop %v707
    %v709 = vmul.f32 %v634, 1.442695
    %v710 = vpow.pop %v709
    %v711 = vmul.f32 %v639, 1.442695
    %v712 = vpow.pop %v711
    %v713 = vmul.f32 %v644, 1.442695
    %v714 = vpow.pop %v713
    %v715 = vmul.f32 %v649, 1.442695
    %v716 = vpow.pop %v715
    %v717 = vmul.f32 %v654, 1.442695
    %v718 = vpow.pop %v717
    %v719 = vmul.f32 %v659, 1.442695
    %v720 = vpow.pop %v719
    %v721 = vmul.f32 %v664, 1.442695
    %v722 = vpow.pop %v721
    %v723 = vmul.f32 %v669, 1.442695
    %v724 = vpow.pop %v723
    %v725 = vmul.f32 %v674, 1.442695
    %v726 = vpow.pop %v725
    %v727 = vmul.f32 %v679, 1.442695
    %v728 = vpow.pop %v727
    %v729 = vmul.f32 %v684, 1.442695
    %v730 = vpow.pop %v729
    %v731 = vmul.f32 %v689, 1.442695
    %v732 = vpow.pop %v731
    %v733 = vmul.f32 %v694, 1.442695
    %v734 = vpow.pop %v733
    %v735 = vmul.f32 %v699, 1.442695
    %v736 = vpow.pop %v735
    %v737 = vmul.f32 %v704, 1.442695
    %v738 = vpow.pop %v737
    %739 = vmatprep.subr.mxu0 0.0
    %740 = vmatpush1.xpose.msra.mxu0 %v192
    %741 = vmatprep.subr.mxu0 0.0
    %742 = vmatpush1.xpose.msra.mxu0 %v193
    %743 = vmatprep.subr.mxu0 0.0
    %744 = vmatpush1.xpose.msra.mxu0 %v194
    %745 = vmatprep.subr.mxu0 0.0
    %746 = vmatpush1.xpose.msra.mxu0 %v195
    %747 = vmatprep.subr.mxu0 0.0
    %748 = vmatpush1.xpose.msra.mxu0 %v196
    %749 = vmatprep.subr.mxu0 0.0
    %750 = vmatpush1.xpose.msra.mxu0 %v197
    %751 = vmatprep.subr.mxu0 0.0
    %752 = vmatpush1.xpose.msra.mxu0 %v198
    %753 = vmatprep.subr.mxu0 0.0
    %754 = vmatpush1.xpose.msra.mxu0 %v199
    %755 = vmatprep.subr.mxu0 0.0
    %756 = vmatpush1.xpose.msra.mxu0 %v200
    %757 = vmatprep.subr.mxu0 0.0
    %758 = vmatpush1.xpose.msra.mxu0 %v201
    %759 = vmatprep.subr.mxu0 0.0
    %760 = vmatpush1.xpose.msra.mxu0 %v202
    %761 = vmatprep.subr.mxu0 0.0
    %762 = vmatpush1.xpose.msra.mxu0 %v203
    %763 = vmatprep.subr.mxu0 0.0
    %764 = vmatpush1.xpose.msra.mxu0 %v204
    %765 = vmatprep.subr.mxu0 0.0
    %766 = vmatpush1.xpose.msra.mxu0 %v205
    %767 = vmatprep.subr.mxu0 0.0
    %768 = vmatpush1.xpose.msra.mxu0 %v206
    %769 = vmatprep.subr.mxu0 0.0
    %770 = vmatpush1.xpose.msra.mxu0 %v207
    %771 = vmatprep.subr.mxu0 0.0
    %772 = vmatpush1.xpose.msra.mxu0 0.0
    %773 = vmatprep.subr.mxu0 0.0
    %774 = vmatpush1.xpose.msra.mxu0 0.0
    %775 = vmatprep.subr.mxu0 0.0
    %776 = vmatpush1.xpose.msra.mxu0 0.0
    %777 = vmatprep.subr.mxu0 0.0
    %778 = vmatpush1.xpose.msra.mxu0 0.0
    %779 = vmatprep.subr.mxu0 0.0
    %780 = vmatpush1.xpose.msra.mxu0 0.0
    %781 = vmatprep.subr.mxu0 0.0
    %782 = vmatpush1.xpose.msra.mxu0 0.0
    %783 = vmatprep.subr.mxu0 0.0
    %784 = vmatpush1.xpose.msra.mxu0 0.0
    %785 = vmatprep.subr.mxu0 0.0
    %786 = vmatpush1.xpose.msra.mxu0 0.0
    %787 = vmatprep.subr.mxu0 0.0
    %788 = vmatpush1.xpose.msra.mxu0 0.0
    %789 = vmatprep.subr.mxu0 0.0
    %790 = vmatpush1.xpose.msra.mxu0 0.0
    %791 = vmatprep.subr.mxu0 0.0
    %792 = vmatpush1.xpose.msra.mxu0 0.0
    %793 = vmatprep.subr.mxu0 0.0
    %794 = vmatpush1.xpose.msra.mxu0 0.0
    %795 = vmatprep.subr.mxu0 0.0
    %796 = vmatpush1.xpose.msra.mxu0 0.0
    %797 = vmatprep.subr.mxu0 0.0
    %798 = vmatpush1.xpose.msra.mxu0 0.0
    %799 = vmatprep.subr.mxu0 0.0
    %800 = vmatpush1.xpose.msra.mxu0 0.0
    %801 = vmatprep.subr.mxu0 0.0
    %802 = vmatpush1.xpose.msra.mxu0 0.0
    %803 = vmatprep.mubr.f32.mxu0 0.0
    %804 = vmatmul.mubr.f32.gmra.mrb[0].mxu0 %v160
    %v805 = vpop.f32.mrb[0].mxu0
    %v806 = vadd.f32 0.0, %v805
    %v807 = vpop.f32.mrb[0].mxu0
    %808 = vmatprep.mubr.f32.mxu0 0.0
    %809 = vmatmul.mubr.f32.gmra.mrb[0].mxu0 %v161
    %v810 = vpop.f32.mrb[0].mxu0
    %v811 = vadd.f32 0.0, %v810
    %v812 = vpop.f32.mrb[0].mxu0
    %813 = vmatprep.mubr.f32.mxu0 0.0
    %814 = vmatmul.mubr.f32.gmra.mrb[0].mxu0 %v162
    %v815 = vpop.f32.mrb[0].mxu0
    %v816 = vadd.f32 0.0, %v815
    %v817 = vpop.f32.mrb[0].mxu0
    %818 = vmatprep.mubr.f32.mxu0 0.0
    %819 = vmatmul.mubr.f32.gmra.mrb[0].mxu0 %v163
    %v820 = vpop.f32.mrb[0].mxu0
    %v821 = vadd.f32 0.0, %v820
    %v822 = vpop.f32.mrb[0].mxu0
    %823 = vmatprep.mubr.f32.mxu0 0.0
    %824 = vmatmul.mubr.f32.gmra.mrb[0].mxu0 %v164
    %v825 = vpop.f32.mrb[0].mxu0
    %v826 = vadd.f32 0.0, %v825
    %v827 = vpop.f32.mrb[0].mxu0
    %828 = vmatprep.mubr.f32.mxu0 0.0
    %829 = vmatmul.mubr.f32.gmra.mrb[0].mxu0 %v165
    %v830 = vpop.f32.mrb[0].mxu0
    %v831 = vadd.f32 0.0, %v830
    %v832 = vpop.f32.mrb[0].mxu0
    %833 = vmatprep.mubr.f32.mxu0 0.0
    %834 = vmatmul.mubr.f32.gmra.mrb[0].mxu0 %v166
    %v835 = vpop.f32.mrb[0].mxu0
    %v836 = vadd.f32 0.0, %v835
    %v837 = vpop.f32.mrb[0].mxu0
    %838 = vmatprep.mubr.f32.mxu0 0.0
    %839 = vmatmul.mubr.f32.gmra.mrb[0].mxu0 %v167
    %v840 = vpop.f32.mrb[0].mxu0
    %v841 = vadd.f32 0.0, %v840
    %v842 = vpop.f32.mrb[0].mxu0
    %843 = vmatprep.mubr.f32.mxu0 0.0
    %844 = vmatmul.mubr.f32.gmra.mrb[0].mxu0 %v168
    %v845 = vpop.f32.mrb[0].mxu0
    %v846 = vadd.f32 0.0, %v845
    %v847 = vpop.f32.mrb[0].mxu0
    %848 = vmatprep.mubr.f32.mxu0 0.0
    %849 = vmatmul.mubr.f32.gmra.mrb[0].mxu0 %v169
    %v850 = vpop.f32.mrb[0].mxu0
    %v851 = vadd.f32 0.0, %v850
    %v852 = vpop.f32.mrb[0].mxu0
    %853 = vmatprep.mubr.f32.mxu0 0.0
    %854 = vmatmul.mubr.f32.gmra.mrb[0].mxu0 %v170
    %v855 = vpop.f32.mrb[0].mxu0
    %v856 = vadd.f32 0.0, %v855
    %v857 = vpop.f32.mrb[0].mxu0
    %858 = vmatprep.mubr.f32.mxu0 0.0
    %859 = vmatmul.mubr.f32.gmra.mrb[0].mxu0 %v171
    %v860 = vpop.f32.mrb[0].mxu0
    %v861 = vadd.f32 0.0, %v860
    %v862 = vpop.f32.mrb[0].mxu0
    %863 = vmatprep.mubr.f32.mxu0 0.0
    %864 = vmatmul.mubr.f32.gmra.mrb[0].mxu0 %v172
    %v865 = vpop.f32.mrb[0].mxu0
    %v866 = vadd.f32 0.0, %v865
    %v867 = vpop.f32.mrb[0].mxu0
    %868 = vmatprep.mubr.f32.mxu0 0.0
    %869 = vmatmul.mubr.f32.gmra.mrb[0].mxu0 %v173
    %v870 = vpop.f32.mrb[0].mxu0
    %v871 = vadd.f32 0.0, %v870
    %v872 = vpop.f32.mrb[0].mxu0
    %873 = vmatprep.mubr.f32.mxu0 0.0
    %874 = vmatmul.mubr.f32.gmra.mrb[0].mxu0 %v174
    %v875 = vpop.f32.mrb[0].mxu0
    %v876 = vadd.f32 0.0, %v875
    %v877 = vpop.f32.mrb[0].mxu0
    %878 = vmatprep.mubr.f32.mxu0 0.0
    %879 = vmatmul.mubr.f32.gmra.mrb[0].mxu0 %v175
    %v880 = vpop.f32.mrb[0].mxu0
    %v881 = vadd.f32 0.0, %v880
    %v882 = vpop.f32.mrb[0].mxu0
    %883 = vdwg.mxu0
    %v884 = vmul.f32 %v806, 1.442695
    %v885 = vpow.pop %v884
    %v886 = vmul.f32 %v811, 1.442695
    %v887 = vpow.pop %v886
    %v888 = vmul.f32 %v816, 1.442695
    %v889 = vpow.pop %v888
    %v890 = vmul.f32 %v821, 1.442695
    %v891 = vpow.pop %v890
    %v892 = vmul.f32 %v826, 1.442695
    %v893 = vpow.pop %v892
    %v894 = vmul.f32 %v831, 1.442695
    %v895 = vpow.pop %v894
    %v896 = vmul.f32 %v836, 1.442695
    %v897 = vpow.pop %v896
    %v898 = vmul.f32 %v841, 1.442695
    %v899 = vpow.pop %v898
    %v900 = vmul.f32 %v846, 1.442695
    %v901 = vpow.pop %v900
    %v902 = vmul.f32 %v851, 1.442695
    %v903 = vpow.pop %v902
    %v904 = vmul.f32 %v856, 1.442695
    %v905 = vpow.pop %v904
    %v906 = vmul.f32 %v861, 1.442695
    %v907 = vpow.pop %v906
    %v908 = vmul.f32 %v866, 1.442695
    %v909 = vpow.pop %v908
    %v910 = vmul.f32 %v871, 1.442695
    %v911 = vpow.pop %v910
    %v912 = vmul.f32 %v876, 1.442695
    %v913 = vpow.pop %v912
    %v914 = vmul.f32 %v881, 1.442695
    %v915 = vpow.pop %v914
    %v916 = vld [vmem:[#allocation2] sm:$0xff]
    %v917 = vld [vmem:[#allocation2 + $0x8] sm:$0xff]
    %v918 = vld [vmem:[#allocation2 + $0x10] sm:$0xff]
    %v919 = vld [vmem:[#allocation2 + $0x18] sm:$0xff]
    %v920 = vld [vmem:[#allocation2 + $0x20] sm:$0xff]
    %v921 = vld [vmem:[#allocation2 + $0x28] sm:$0xff]
    %v922 = vld [vmem:[#allocation2 + $0x30] sm:$0xff]
    %v923 = vld [vmem:[#allocation2 + $0x38] sm:$0xff]
    %v924 = vld [vmem:[#allocation2 + $0x40] sm:$0xff]
    %v925 = vld [vmem:[#allocation2 + $0x48] sm:$0xff]
    %v926 = vld [vmem:[#allocation2 + $0x50] sm:$0xff]
    %v927 = vld [vmem:[#allocation2 + $0x58] sm:$0xff]
    %v928 = vld [vmem:[#allocation2 + $0x60] sm:$0xff]
    %v929 = vld [vmem:[#allocation2 + $0x68] sm:$0xff]
    %v930 = vld [vmem:[#allocation2 + $0x70] sm:$0xff]
    %v931 = vld [vmem:[#allocation2 + $0x78] sm:$0xff]
    %v932 = vadd.f32 %v708, %v354
    %v933 = vadd.f32 %v710, %v356
    %v934 = vadd.f32 %v712, %v358
    %v935 = vadd.f32 %v714, %v360
    %v936 = vadd.f32 %v716, %v362
    %v937 = vadd.f32 %v718, %v364
    %v938 = vadd.f32 %v720, %v366
    %v939 = vadd.f32 %v722, %v368
    %v940 = vadd.f32 %v724, %v370
    %v941 = vadd.f32 %v726, %v372
    %v942 = vadd.f32 %v728, %v374
    %v943 = vadd.f32 %v730, %v376
    %v944 = vadd.f32 %v732, %v378
    %v945 = vadd.f32 %v734, %v380
    %v946 = vadd.f32 %v736, %v382
    %v947 = vadd.f32 %v738, %v384
    %v948 = vadd.f32 %v916, %v932
    %v949 = vadd.f32 %v917, %v933
    %v950 = vadd.f32 %v918, %v934
    %v951 = vadd.f32 %v919, %v935
    %v952 = vadd.f32 %v920, %v936
    %v953 = vadd.f32 %v921, %v937
    %v954 = vadd.f32 %v922, %v938
    %v955 = vadd.f32 %v923, %v939
    %v956 = vadd.f32 %v924, %v940
    %v957 = vadd.f32 %v925, %v941
    %v958 = vadd.f32 %v926, %v942
    %v959 = vadd.f32 %v927, %v943
    %v960 = vadd.f32 %v928, %v944
    %v961 = vadd.f32 %v929, %v945
    %v962 = vadd.f32 %v930, %v946
    %v963 = vadd.f32 %v931, %v947
    %964 = vst [vmem:[#allocation2] sm:$0xff] %v948
    %965 = vst [vmem:[#allocation2 + $0x8] sm:$0xff] %v949
    %966 = vst [vmem:[#allocation2 + $0x10] sm:$0xff] %v950
    %967 = vst [vmem:[#allocation2 + $0x18] sm:$0xff] %v951
    %968 = vst [vmem:[#allocation2 + $0x20] sm:$0xff] %v952
    %969 = vst [vmem:[#allocation2 + $0x28] sm:$0xff] %v953
    %970 = vst [vmem:[#allocation2 + $0x30] sm:$0xff] %v954
    %971 = vst [vmem:[#allocation2 + $0x38] sm:$0xff] %v955
    %972 = vst [vmem:[#allocation2 + $0x40] sm:$0xff] %v956
    %973 = vst [vmem:[#allocation2 + $0x48] sm:$0xff] %v957
    %974 = vst [vmem:[#allocation2 + $0x50] sm:$0xff] %v958
    %975 = vst [vmem:[#allocation2 + $0x58] sm:$0xff] %v959
    %976 = vst [vmem:[#allocation2 + $0x60] sm:$0xff] %v960
    %977 = vst [vmem:[#allocation2 + $0x68] sm:$0xff] %v961
    %978 = vst [vmem:[#allocation2 + $0x70] sm:$0xff] %v962
    %979 = vst [vmem:[#allocation2 + $0x78] sm:$0xff] %v963
    %v980 = vld [vmem:[#allocation3] sm:$0xff]
    %v981 = vld [vmem:[#allocation3 + $0x8] sm:$0xff]
    %v982 = vld [vmem:[#allocation3 + $0x10] sm:$0xff]
    %v983 = vld [vmem:[#allocation3 + $0x18] sm:$0xff]
    %v984 = vld [vmem:[#allocation3 + $0x20] sm:$0xff]
    %v985 = vld [vmem:[#allocation3 + $0x28] sm:$0xff]
    %v986 = vld [vmem:[#allocation3 + $0x30] sm:$0xff]
    %v987 = vld [vmem:[#allocation3 + $0x38] sm:$0xff]
    %v988 = vld [vmem:[#allocation3 + $0x40] sm:$0xff]
    %v989 = vld [vmem:[#allocation3 + $0x48] sm:$0xff]
    %v990 = vld [vmem:[#allocation3 + $0x50] sm:$0xff]
    %v991 = vld [vmem:[#allocation3 + $0x58] sm:$0xff]
    %v992 = vld [vmem:[#allocation3 + $0x60] sm:$0xff]
    %v993 = vld [vmem:[#allocation3 + $0x68] sm:$0xff]
    %v994 = vld [vmem:[#allocation3 + $0x70] sm:$0xff]
    %v995 = vld [vmem:[#allocation3 + $0x78] sm:$0xff]
    %v996 = vadd.f32 %v531, %v885
    %v997 = vadd.f32 %v533, %v887
    %v998 = vadd.f32 %v535, %v889
    %v999 = vadd.f32 %v537, %v891
    %v1000 = vadd.f32 %v539, %v893
    %v1001 = vadd.f32 %v541, %v895
    %v1002 = vadd.f32 %v543, %v897
    %v1003 = vadd.f32 %v545, %v899
    %v1004 = vadd.f32 %v547, %v901
    %v1005 = vadd.f32 %v549, %v903
    %v1006 = vadd.f32 %v551, %v905
    %v1007 = vadd.f32 %v553, %v907
    %v1008 = vadd.f32 %v555, %v909
    %v1009 = vadd.f32 %v557, %v911
    %v1010 = vadd.f32 %v559, %v913
    %v1011 = vadd.f32 %v561, %v915
    %v1012 = vadd.f32 %v980, %v996
    %v1013 = vadd.f32 %v981, %v997
    %v1014 = vadd.f32 %v982, %v998
    %v1015 = vadd.f32 %v983, %v999
    %v1016 = vadd.f32 %v984, %v1000
    %v1017 = vadd.f32 %v985, %v1001
    %v1018 = vadd.f32 %v986, %v1002
    %v1019 = vadd.f32 %v987, %v1003
    %v1020 = vadd.f32 %v988, %v1004
    %v1021 = vadd.f32 %v989, %v1005
    %v1022 = vadd.f32 %v990, %v1006
    %v1023 = vadd.f32 %v991, %v1007
    %v1024 = vadd.f32 %v992, %v1008
    %v1025 = vadd.f32 %v993, %v1009
    %v1026 = vadd.f32 %v994, %v1010
    %v1027 = vadd.f32 %v995, %v1011
    %1028 = vst [vmem:[#allocation3] sm:$0xff] %v1012
    %1029 = vst [vmem:[#allocation3 + $0x8] sm:$0xff] %v1013
    %1030 = vst [vmem:[#allocation3 + $0x10] sm:$0xff] %v1014
    %1031 = vst [vmem:[#allocation3 + $0x18] sm:$0xff] %v1015
    %1032 = vst [vmem:[#allocation3 + $0x20] sm:$0xff] %v1016
    %1033 = vst [vmem:[#allocation3 + $0x28] sm:$0xff] %v1017
    %1034 = vst [vmem:[#allocation3 + $0x30] sm:$0xff] %v1018
    %1035 = vst [vmem:[#allocation3 + $0x38] sm:$0xff] %v1019
    %1036 = vst [vmem:[#allocation3 + $0x40] sm:$0xff] %v1020
    %1037 = vst [vmem:[#allocation3 + $0x48] sm:$0xff] %v1021
    %1038 = vst [vmem:[#allocation3 + $0x50] sm:$0xff] %v1022
    %1039 = vst [vmem:[#allocation3 + $0x58] sm:$0xff] %v1023
    %1040 = vst [vmem:[#allocation3 + $0x60] sm:$0xff] %v1024
    %1041 = vst [vmem:[#allocation3 + $0x68] sm:$0xff] %v1025
    %1042 = vst [vmem:[#allocation3 + $0x70] sm:$0xff] %v1026
    %1043 = vst [vmem:[#allocation3 + $0x78] sm:$0xff] %v1027
    %v1044 = vld [vmem:[#allocation4] sm:$0xff]
    %v1045 = vld [vmem:[#allocation4 + $0x8] sm:$0xff]
    %v1046 = vld [vmem:[#allocation4 + $0x10] sm:$0xff]
    %v1047 = vld [vmem:[#allocation4 + $0x18] sm:$0xff]
    %v1048 = vld [vmem:[#allocation4 + $0x20] sm:$0xff]
    %v1049 = vld [vmem:[#allocation4 + $0x28] sm:$0xff]
    %v1050 = vld [vmem:[#allocation4 + $0x30] sm:$0xff]
    %v1051 = vld [vmem:[#allocation4 + $0x38] sm:$0xff]
    %v1052 = vld [vmem:[#allocation4 + $0x40] sm:$0xff]
    %v1053 = vld [vmem:[#allocation4 + $0x48] sm:$0xff]
    %v1054 = vld [vmem:[#allocation4 + $0x50] sm:$0xff]
    %v1055 = vld [vmem:[#allocation4 + $0x58] sm:$0xff]
    %v1056 = vld [vmem:[#allocation4 + $0x60] sm:$0xff]
    %v1057 = vld [vmem:[#allocation4 + $0x68] sm:$0xff]
    %v1058 = vld [vmem:[#allocation4 + $0x70] sm:$0xff]
    %v1059 = vld [vmem:[#allocation4 + $0x78] sm:$0xff]
    %v1060 = vadd.f32 %v1044, %v354
    %v1061 = vadd.f32 %v1045, %v356
    %v1062 = vadd.f32 %v1046, %v358
    %v1063 = vadd.f32 %v1047, %v360
    %v1064 = vadd.f32 %v1048, %v362
    %v1065 = vadd.f32 %v1049, %v364
    %v1066 = vadd.f32 %v1050, %v366
    %v1067 = vadd.f32 %v1051, %v368
    %v1068 = vadd.f32 %v1052, %v370
    %v1069 = vadd.f32 %v1053, %v372
    %v1070 = vadd.f32 %v1054, %v374
    %v1071 = vadd.f32 %v1055, %v376
    %v1072 = vadd.f32 %v1056, %v378
    %v1073 = vadd.f32 %v1057, %v380
    %v1074 = vadd.f32 %v1058, %v382
    %v1075 = vadd.f32 %v1059, %v384
    %1076 = vst [vmem:[#allocation4] sm:$0xff] %v1060
    %1077 = vst [vmem:[#allocation4 + $0x8] sm:$0xff] %v1061
    %1078 = vst [vmem:[#allocation4 + $0x10] sm:$0xff] %v1062
    %1079 = vst [vmem:[#allocation4 + $0x18] sm:$0xff] %v1063
    %1080 = vst [vmem:[#allocation4 + $0x20] sm:$0xff] %v1064
    %1081 = vst [vmem:[#allocation4 + $0x28] sm:$0xff] %v1065
    %1082 = vst [vmem:[#allocation4 + $0x30] sm:$0xff] %v1066
    %1083 = vst [vmem:[#allocation4 + $0x38] sm:$0xff] %v1067
    %1084 = vst [vmem:[#allocation4 + $0x40] sm:$0xff] %v1068
    %1085 = vst [vmem:[#allocation4 + $0x48] sm:$0xff] %v1069
    %1086 = vst [vmem:[#allocation4 + $0x50] sm:$0xff] %v1070
    %1087 = vst [vmem:[#allocation4 + $0x58] sm:$0xff] %v1071
    %1088 = vst [vmem:[#allocation4 + $0x60] sm:$0xff] %v1072
    %1089 = vst [vmem:[#allocation4 + $0x68] sm:$0xff] %v1073
    %1090 = vst [vmem:[#allocation4 + $0x70] sm:$0xff] %v1074
    %1091 = vst [vmem:[#allocation4 + $0x78] sm:$0xff] %v1075
    %v1092 = vld [vmem:[#allocation5] sm:$0xff]
    %v1093 = vld [vmem:[#allocation5 + $0x8] sm:$0xff]
    %v1094 = vld [vmem:[#allocation5 + $0x10] sm:$0xff]
    %v1095 = vld [vmem:[#allocation5 + $0x18] sm:$0xff]
    %v1096 = vld [vmem:[#allocation5 + $0x20] sm:$0xff]
    %v1097 = vld [vmem:[#allocation5 + $0x28] sm:$0xff]
    %v1098 = vld [vmem:[#allocation5 + $0x30] sm:$0xff]
    %v1099 = vld [vmem:[#allocation5 + $0x38] sm:$0xff]
    %v1100 = vld [vmem:[#allocation5 + $0x40] sm:$0xff]
    %v1101 = vld [vmem:[#allocation5 + $0x48] sm:$0xff]
    %v1102 = vld [vmem:[#allocation5 + $0x50] sm:$0xff]
    %v1103 = vld [vmem:[#allocation5 + $0x58] sm:$0xff]
    %v1104 = vld [vmem:[#allocation5 + $0x60] sm:$0xff]
    %v1105 = vld [vmem:[#allocation5 + $0x68] sm:$0xff]
    %v1106 = vld [vmem:[#allocation5 + $0x70] sm:$0xff]
    %v1107 = vld [vmem:[#allocation5 + $0x78] sm:$0xff]
    %v1108 = vadd.f32 %v1092, %v531
    %v1109 = vadd.f32 %v1093, %v533
    %v1110 = vadd.f32 %v1094, %v535
    %v1111 = vadd.f32 %v1095, %v537
    %v1112 = vadd.f32 %v1096, %v539
    %v1113 = vadd.f32 %v1097, %v541
    %v1114 = vadd.f32 %v1098, %v543
    %v1115 = vadd.f32 %v1099, %v545
    %v1116 = vadd.f32 %v1100, %v547
    %v1117 = vadd.f32 %v1101, %v549
    %v1118 = vadd.f32 %v1102, %v551
    %v1119 = vadd.f32 %v1103, %v553
    %v1120 = vadd.f32 %v1104, %v555
    %v1121 = vadd.f32 %v1105, %v557
    %v1122 = vadd.f32 %v1106, %v559
    %v1123 = vadd.f32 %v1107, %v561
    %1124 = vst [vmem:[#allocation5] sm:$0xff] %v1108
    %1125 = vst [vmem:[#allocation5 + $0x8] sm:$0xff] %v1109
    %1126 = vst [vmem:[#allocation5 + $0x10] sm:$0xff] %v1110
    %1127 = vst [vmem:[#allocation5 + $0x18] sm:$0xff] %v1111
    %1128 = vst [vmem:[#allocation5 + $0x20] sm:$0xff] %v1112
    %1129 = vst [vmem:[#allocation5 + $0x28] sm:$0xff] %v1113
    %1130 = vst [vmem:[#allocation5 + $0x30] sm:$0xff] %v1114
    %1131 = vst [vmem:[#allocation5 + $0x38] sm:$0xff] %v1115
    %1132 = vst [vmem:[#allocation5 + $0x40] sm:$0xff] %v1116
    %1133 = vst [vmem:[#allocation5 + $0x48] sm:$0xff] %v1117
    %1134 = vst [vmem:[#allocation5 + $0x50] sm:$0xff] %v1118
    %1135 = vst [vmem:[#allocation5 + $0x58] sm:$0xff] %v1119
    %1136 = vst [vmem:[#allocation5 + $0x60] sm:$0xff] %v1120
    %1137 = vst [vmem:[#allocation5 + $0x68] sm:$0xff] %v1121
    %1138 = vst [vmem:[#allocation5 + $0x70] sm:$0xff] %v1122
    %1139 = vst [vmem:[#allocation5 + $0x78] sm:$0xff] %v1123
    // Predicated region
    $region38: #{tpu_custom_call.1} parent=1 // pred_check
      %p1140 = pneg %p76
    $region39: #{tpu_custom_call.1} parent=1 // pred_check_branch
      %1142 = sbr.rel (%p1140) target = $region41
    $region40: #{tpu_custom_call.1} parent=1 // pred_region
      %v1143 = vmul.f32 %v144, %v160
      %v1144 = vmul.f32 %v145, %v161
      %v1145 = vmul.f32 %v146, %v162
      %v1146 = vmul.f32 %v147, %v163
      %v1147 = vmul.f32 %v148, %v164
      %v1148 = vmul.f32 %v149, %v165
      %v1149 = vmul.f32 %v150, %v166
      %v1150 = vmul.f32 %v151, %v167
      %v1151 = vmul.f32 %v152, %v168
      %v1152 = vmul.f32 %v153, %v169
      %v1153 = vmul.f32 %v154, %v170
      %v1154 = vmul.f32 %v155, %v171
      %v1155 = vmul.f32 %v156, %v172
      %v1156 = vmul.f32 %v157, %v173
      %v1157 = vmul.f32 %v158, %v174
      %v1158 = vmul.f32 %v159, %v175
      %1159 = vadd.xlane.f32.xlu0 %v1143
      %v1160 = vpop.xlane.xlu0 %1159
      %1161 = vadd.xlane.f32.xlu0 %v1144
      %v1162 = vpop.xlane.xlu0 %1161
      %1163 = vadd.xlane.f32.xlu0 %v1145
      %v1164 = vpop.xlane.xlu0 %1163
      %1165 = vadd.xlane.f32.xlu0 %v1146
      %v1166 = vpop.xlane.xlu0 %1165
      %1167 = vadd.xlane.f32.xlu0 %v1147
      %v1168 = vpop.xlane.xlu0 %1167
      %1169 = vadd.xlane.f32.xlu0 %v1148
      %v1170 = vpop.xlane.xlu0 %1169
      %1171 = vadd.xlane.f32.xlu0 %v1149
      %v1172 = vpop.xlane.xlu0 %1171
      %1173 = vadd.xlane.f32.xlu0 %v1150
      %v1174 = vpop.xlane.xlu0 %1173
      %1175 = vadd.xlane.f32.xlu0 %v1151
      %v1176 = vpop.xlane.xlu0 %1175
      %1177 = vadd.xlane.f32.xlu0 %v1152
      %v1178 = vpop.xlane.xlu0 %1177
      %1179 = vadd.xlane.f32.xlu0 %v1153
      %v1180 = vpop.xlane.xlu0 %1179
      %1181 = vadd.xlane.f32.xlu0 %v1154
      %v1182 = vpop.xlane.xlu0 %1181
      %1183 = vadd.xlane.f32.xlu0 %v1155
      %v1184 = vpop.xlane.xlu0 %1183
      %1185 = vadd.xlane.f32.xlu0 %v1156
      %v1186 = vpop.xlane.xlu0 %1185
      %1187 = vadd.xlane.f32.xlu0 %v1157
      %v1188 = vpop.xlane.xlu0 %1187
      %1189 = vadd.xlane.f32.xlu0 %v1158
      %v1190 = vpop.xlane.xlu0 %1189
      %s1191 = smul.u32 0, 128
      %v1192 = vlaneseq
      %v1193 = vshrl.u32 %v1192, 7
      %v1194 = vadd.s32 %v1193, 8
      %v1195 = vadd.s32 %v1193, 16
      %v1196 = vadd.s32 %v1193, 24
      %v1197 = vadd.s32 %v1193, 32
      %v1198 = vadd.s32 %v1193, 40
      %v1199 = vadd.s32 %v1193, 48
      %v1200 = vadd.s32 %v1193, 56
      %v1201 = vadd.s32 %v1193, 64
      %v1202 = vadd.s32 %v1193, 72
      %v1203 = vadd.s32 %v1193, 80
      %v1204 = vadd.s32 %v1193, 88
      %v1205 = vadd.s32 %v1193, 96
      %v1206 = vadd.s32 %v1193, 104
      %v1207 = vadd.s32 %v1193, 112
      %v1208 = vadd.s32 %v1193, 120
      %v1209 = vstv %s1191
      %v1210 = vadd.s32 %v1209, %v1193
      %v1211 = vadd.s32 %v1209, %v1194
      %v1212 = vadd.s32 %v1209, %v1195
      %v1213 = vadd.s32 %v1209, %v1196
      %v1214 = vadd.s32 %v1209, %v1197
      %v1215 = vadd.s32 %v1209, %v1198
      %v1216 = vadd.s32 %v1209, %v1199
      %v1217 = vadd.s32 %v1209, %v1200
      %v1218 = vadd.s32 %v1209, %v1201
      %v1219 = vadd.s32 %v1209, %v1202
      %v1220 = vadd.s32 %v1209, %v1203
      %v1221 = vadd.s32 %v1209, %v1204
      %v1222 = vadd.s32 %v1209, %v1205
      %v1223 = vadd.s32 %v1209, %v1206
      %v1224 = vadd.s32 %v1209, %v1207
      %v1225 = vadd.s32 %v1209, %v1208
      %vm1226 = vcmp.lt.s32.totalorder %v1210, 8
      %vm1227 = vcmp.lt.s32.totalorder %v1211, 8
      %vm1228 = vcmp.lt.s32.totalorder %v1212, 8
      %vm1229 = vcmp.lt.s32.totalorder %v1213, 8
      %vm1230 = vcmp.lt.s32.totalorder %v1214, 8
      %vm1231 = vcmp.lt.s32.totalorder %v1215, 8
      %vm1232 = vcmp.lt.s32.totalorder %v1216, 8
      %vm1233 = vcmp.lt.s32.totalorder %v1217, 8
      %vm1234 = vcmp.lt.s32.totalorder %v1218, 8
      %vm1235 = vcmp.lt.s32.totalorder %v1219, 8
      %vm1236 = vcmp.lt.s32.totalorder %v1220, 8
      %vm1237 = vcmp.lt.s32.totalorder %v1221, 8
      %vm1238 = vcmp.lt.s32.totalorder %v1222, 8
      %vm1239 = vcmp.lt.s32.totalorder %v1223, 8
      %vm1240 = vcmp.lt.s32.totalorder %v1224, 8
      %vm1241 = vcmp.lt.s32.totalorder %v1225, 8
      %v1242 = vsel %vm1226, 1, 0
      %v1243 = vsel %vm1227, 1, 0
      %v1244 = vsel %vm1228, 1, 0
      %v1245 = vsel %vm1229, 1, 0
      %v1246 = vsel %vm1230, 1, 0
      %v1247 = vsel %vm1231, 1, 0
      %v1248 = vsel %vm1232, 1, 0
      %v1249 = vsel %vm1233, 1, 0
      %v1250 = vsel %vm1234, 1, 0
      %v1251 = vsel %vm1235, 1, 0
      %v1252 = vsel %vm1236, 1, 0
      %v1253 = vsel %vm1237, 1, 0
      %v1254 = vsel %vm1238, 1, 0
      %v1255 = vsel %vm1239, 1, 0
      %v1256 = vsel %vm1240, 1, 0
      %v1257 = vsel %vm1241, 1, 0
      %v1258 = vcvt.s32.f32 %v1242
      %v1259 = vcvt.s32.f32 %v1243
      %v1260 = vcvt.s32.f32 %v1244
      %v1261 = vcvt.s32.f32 %v1245
      %v1262 = vcvt.s32.f32 %v1246
      %v1263 = vcvt.s32.f32 %v1247
      %v1264 = vcvt.s32.f32 %v1248
      %v1265 = vcvt.s32.f32 %v1249
      %v1266 = vcvt.s32.f32 %v1250
      %v1267 = vcvt.s32.f32 %v1251
      %v1268 = vcvt.s32.f32 %v1252
      %v1269 = vcvt.s32.f32 %v1253
      %v1270 = vcvt.s32.f32 %v1254
      %v1271 = vcvt.s32.f32 %v1255
      %v1272 = vcvt.s32.f32 %v1256
      %v1273 = vcvt.s32.f32 %v1257
      %v1274 = vld [vmem:[#allocation2] sm:$0xff]
      %v1275 = vld [vmem:[#allocation2 + $0x8] sm:$0xff]
      %v1276 = vld [vmem:[#allocation2 + $0x10] sm:$0xff]
      %v1277 = vld [vmem:[#allocation2 + $0x18] sm:$0xff]
      %v1278 = vld [vmem:[#allocation2 + $0x20] sm:$0xff]
      %v1279 = vld [vmem:[#allocation2 + $0x28] sm:$0xff]
      %v1280 = vld [vmem:[#allocation2 + $0x30] sm:$0xff]
      %v1281 = vld [vmem:[#allocation2 + $0x38] sm:$0xff]
      %v1282 = vld [vmem:[#allocation2 + $0x40] sm:$0xff]
      %v1283 = vld [vmem:[#allocation2 + $0x48] sm:$0xff]
      %v1284 = vld [vmem:[#allocation2 + $0x50] sm:$0xff]
      %v1285 = vld [vmem:[#allocation2 + $0x58] sm:$0xff]
      %v1286 = vld [vmem:[#allocation2 + $0x60] sm:$0xff]
      %v1287 = vld [vmem:[#allocation2 + $0x68] sm:$0xff]
      %v1288 = vld [vmem:[#allocation2 + $0x70] sm:$0xff]
      %v1289 = vld [vmem:[#allocation2 + $0x78] sm:$0xff]
      %1290 = vadd.xlane.f32.xlu0 %v1274
      %v1291 = vpop.xlane.xlu0 %1290
      %1292 = vadd.xlane.f32.xlu0 %v1275
      %v1293 = vpop.xlane.xlu0 %1292
      %1294 = vadd.xlane.f32.xlu0 %v1276
      %v1295 = vpop.xlane.xlu0 %1294
      %1296 = vadd.xlane.f32.xlu0 %v1277
      %v1297 = vpop.xlane.xlu0 %1296
      %1298 = vadd.xlane.f32.xlu0 %v1278
      %v1299 = vpop.xlane.xlu0 %1298
      %1300 = vadd.xlane.f32.xlu0 %v1279
      %v1301 = vpop.xlane.xlu0 %1300
      %1302 = vadd.xlane.f32.xlu0 %v1280
      %v1303 = vpop.xlane.xlu0 %1302
      %1304 = vadd.xlane.f32.xlu0 %v1281
      %v1305 = vpop.xlane.xlu0 %1304
      %1306 = vadd.xlane.f32.xlu0 %v1282
      %v1307 = vpop.xlane.xlu0 %1306
      %1308 = vadd.xlane.f32.xlu0 %v1283
      %v1309 = vpop.xlane.xlu0 %1308
      %1310 = vadd.xlane.f32.xlu0 %v1284
      %v1311 = vpop.xlane.xlu0 %1310
      %1312 = vadd.xlane.f32.xlu0 %v1285
      %v1313 = vpop.xlane.xlu0 %1312
      %1314 = vadd.xlane.f32.xlu0 %v1286
      %v1315 = vpop.xlane.xlu0 %1314
      %1316 = vadd.xlane.f32.xlu0 %v1287
      %v1317 = vpop.xlane.xlu0 %1316
      %1318 = vadd.xlane.f32.xlu0 %v1288
      %v1319 = vpop.xlane.xlu0 %1318
      %1320 = vadd.xlane.f32.xlu0 %v1289
      %v1321 = vpop.xlane.xlu0 %1320
      %v1322 = vsub.f32 %v1291, 240.0
      %v1323 = vsub.f32 %v1293, 240.0
      %v1324 = vsub.f32 %v1295, 240.0
      %v1325 = vsub.f32 %v1297, 240.0
      %v1326 = vsub.f32 %v1299, 240.0
      %v1327 = vsub.f32 %v1301, 240.0
      %v1328 = vsub.f32 %v1303, 240.0
      %v1329 = vsub.f32 %v1305, 240.0
      %v1330 = vsub.f32 %v1307, 240.0
      %v1331 = vsub.f32 %v1309, 240.0
      %v1332 = vsub.f32 %v1311, 240.0
      %v1333 = vsub.f32 %v1313, 240.0
      %v1334 = vsub.f32 %v1315, 240.0
      %v1335 = vsub.f32 %v1317, 240.0
      %v1336 = vsub.f32 %v1319, 240.0
      %v1337 = vsub.f32 %v1321, 240.0
      %v1338 = vsub.f32 %v1322, 2.7182817
      %v1339 = vsub.f32 %v1323, 2.7182817
      %v1340 = vsub.f32 %v1324, 2.7182817
      %v1341 = vsub.f32 %v1325, 2.7182817
      %v1342 = vsub.f32 %v1326, 2.7182817
      %v1343 = vsub.f32 %v1327, 2.7182817
      %v1344 = vsub.f32 %v1328, 2.7182817
      %v1345 = vsub.f32 %v1329, 2.7182817
      %v1346 = vsub.f32 %v1330, 2.7182817
      %v1347 = vsub.f32 %v1331, 2.7182817
      %v1348 = vsub.f32 %v1332, 2.7182817
      %v1349 = vsub.f32 %v1333, 2.7182817
      %v1350 = vsub.f32 %v1334, 2.7182817
      %v1351 = vsub.f32 %v1335, 2.7182817
      %v1352 = vsub.f32 %v1336, 2.7182817
      %v1353 = vsub.f32 %v1337, 2.7182817
      %v1354 = vmax.f32 %v1338, 1e-06
      %v1355 = vmax.f32 %v1339, 1e-06
      %v1356 = vmax.f32 %v1340, 1e-06
      %v1357 = vmax.f32 %v1341, 1e-06
      %v1358 = vmax.f32 %v1342, 1e-06
      %v1359 = vmax.f32 %v1343, 1e-06
      %v1360 = vmax.f32 %v1344, 1e-06
      %v1361 = vmax.f32 %v1345, 1e-06
      %v1362 = vmax.f32 %v1346, 1e-06
      %v1363 = vmax.f32 %v1347, 1e-06
      %v1364 = vmax.f32 %v1348, 1e-06
      %v1365 = vmax.f32 %v1349, 1e-06
      %v1366 = vmax.f32 %v1350, 1e-06
      %v1367 = vmax.f32 %v1351, 1e-06
      %v1368 = vmax.f32 %v1352, 1e-06
      %v1369 = vmax.f32 %v1353, 1e-06
      %v1370 = vld [vmem:[#allocation3] sm:$0xff]
      %v1371 = vld [vmem:[#allocation3 + $0x8] sm:$0xff]
      %v1372 = vld [vmem:[#allocation3 + $0x10] sm:$0xff]
      %v1373 = vld [vmem:[#allocation3 + $0x18] sm:$0xff]
      %v1374 = vld [vmem:[#allocation3 + $0x20] sm:$0xff]
      %v1375 = vld [vmem:[#allocation3 + $0x28] sm:$0xff]
      %v1376 = vld [vmem:[#allocation3 + $0x30] sm:$0xff]
      %v1377 = vld [vmem:[#allocation3 + $0x38] sm:$0xff]
      %v1378 = vld [vmem:[#allocation3 + $0x40] sm:$0xff]
      %v1379 = vld [vmem:[#allocation3 + $0x48] sm:$0xff]
      %v1380 = vld [vmem:[#allocation3 + $0x50] sm:$0xff]
      %v1381 = vld [vmem:[#allocation3 + $0x58] sm:$0xff]
      %v1382 = vld [vmem:[#allocation3 + $0x60] sm:$0xff]
      %v1383 = vld [vmem:[#allocation3 + $0x68] sm:$0xff]
      %v1384 = vld [vmem:[#allocation3 + $0x70] sm:$0xff]
      %v1385 = vld [vmem:[#allocation3 + $0x78] sm:$0xff]
      %1386 = vadd.xlane.f32.xlu0 %v1370
      %v1387 = vpop.xlane.xlu0 %1386
      %1388 = vadd.xlane.f32.xlu0 %v1371
      %v1389 = vpop.xlane.xlu0 %1388
      %1390 = vadd.xlane.f32.xlu0 %v1372
      %v1391 = vpop.xlane.xlu0 %1390
      %1392 = vadd.xlane.f32.xlu0 %v1373
      %v1393 = vpop.xlane.xlu0 %1392
      %1394 = vadd.xlane.f32.xlu0 %v1374
      %v1395 = vpop.xlane.xlu0 %1394
      %1396 = vadd.xlane.f32.xlu0 %v1375
      %v1397 = vpop.xlane.xlu0 %1396
      %1398 = vadd.xlane.f32.xlu0 %v1376
      %v1399 = vpop.xlane.xlu0 %1398
      %1400 = vadd.xlane.f32.xlu0 %v1377
      %v1401 = vpop.xlane.xlu0 %1400
      %1402 = vadd.xlane.f32.xlu0 %v1378
      %v1403 = vpop.xlane.xlu0 %1402
      %1404 = vadd.xlane.f32.xlu0 %v1379
      %v1405 = vpop.xlane.xlu0 %1404
      %1406 = vadd.xlane.f32.xlu0 %v1380
      %v1407 = vpop.xlane.xlu0 %1406
      %1408 = vadd.xlane.f32.xlu0 %v1381
      %v1409 = vpop.xlane.xlu0 %1408
      %1410 = vadd.xlane.f32.xlu0 %v1382
      %v1411 = vpop.xlane.xlu0 %1410
      %1412 = vadd.xlane.f32.xlu0 %v1383
      %v1413 = vpop.xlane.xlu0 %1412
      %1414 = vadd.xlane.f32.xlu0 %v1384
      %v1415 = vpop.xlane.xlu0 %1414
      %1416 = vadd.xlane.f32.xlu0 %v1385
      %v1417 = vpop.xlane.xlu0 %1416
      %v1418 = vsub.f32 %v1387, 240.0
      %v1419 = vsub.f32 %v1389, 240.0
      %v1420 = vsub.f32 %v1391, 240.0
      %v1421 = vsub.f32 %v1393, 240.0
      %v1422 = vsub.f32 %v1395, 240.0
      %v1423 = vsub.f32 %v1397, 240.0
      %v1424 = vsub.f32 %v1399, 240.0
      %v1425 = vsub.f32 %v1401, 240.0
      %v1426 = vsub.f32 %v1403, 240.0
      %v1427 = vsub.f32 %v1405, 240.0
      %v1428 = vsub.f32 %v1407, 240.0
      %v1429 = vsub.f32 %v1409, 240.0
      %v1430 = vsub.f32 %v1411, 240.0
      %v1431 = vsub.f32 %v1413, 240.0
      %v1432 = vsub.f32 %v1415, 240.0
      %v1433 = vsub.f32 %v1417, 240.0
      %v1434 = vsub.f32 %v1418, 2.7182817
      %v1435 = vsub.f32 %v1419, 2.7182817
      %v1436 = vsub.f32 %v1420, 2.7182817
      %v1437 = vsub.f32 %v1421, 2.7182817
      %v1438 = vsub.f32 %v1422, 2.7182817
      %v1439 = vsub.f32 %v1423, 2.7182817
      %v1440 = vsub.f32 %v1424, 2.7182817
      %v1441 = vsub.f32 %v1425, 2.7182817
      %v1442 = vsub.f32 %v1426, 2.7182817
      %v1443 = vsub.f32 %v1427, 2.7182817
      %v1444 = vsub.f32 %v1428, 2.7182817
      %v1445 = vsub.f32 %v1429, 2.7182817
      %v1446 = vsub.f32 %v1430, 2.7182817
      %v1447 = vsub.f32 %v1431, 2.7182817
      %v1448 = vsub.f32 %v1432, 2.7182817
      %v1449 = vsub.f32 %v1433, 2.7182817
      %v1450 = vmax.f32 %v1434, 1e-06
      %v1451 = vmax.f32 %v1435, 1e-06
      %v1452 = vmax.f32 %v1436, 1e-06
      %v1453 = vmax.f32 %v1437, 1e-06
      %v1454 = vmax.f32 %v1438, 1e-06
      %v1455 = vmax.f32 %v1439, 1e-06
      %v1456 = vmax.f32 %v1440, 1e-06
      %v1457 = vmax.f32 %v1441, 1e-06
      %v1458 = vmax.f32 %v1442, 1e-06
      %v1459 = vmax.f32 %v1443, 1e-06
      %v1460 = vmax.f32 %v1444, 1e-06
      %v1461 = vmax.f32 %v1445, 1e-06
      %v1462 = vmax.f32 %v1446, 1e-06
      %v1463 = vmax.f32 %v1447, 1e-06
      %v1464 = vmax.f32 %v1448, 1e-06
      %v1465 = vmax.f32 %v1449, 1e-06
      %v1466 = vadd.f32 %v1354, 1e-06
      %v1467 = vadd.f32 %v1355, 1e-06
      %v1468 = vadd.f32 %v1356, 1e-06
      %v1469 = vadd.f32 %v1357, 1e-06
      %v1470 = vadd.f32 %v1358, 1e-06
      %v1471 = vadd.f32 %v1359, 1e-06
      %v1472 = vadd.f32 %v1360, 1e-06
      %v1473 = vadd.f32 %v1361, 1e-06
      %v1474 = vadd.f32 %v1362, 1e-06
      %v1475 = vadd.f32 %v1363, 1e-06
      %v1476 = vadd.f32 %v1364, 1e-06
      %v1477 = vadd.f32 %v1365, 1e-06
      %v1478 = vadd.f32 %v1366, 1e-06
      %v1479 = vadd.f32 %v1367, 1e-06
      %v1480 = vadd.f32 %v1368, 1e-06
      %v1481 = vadd.f32 %v1369, 1e-06
      %v1482 = vlog2.pop %v1466
      %v1483 = vmul.f32 %v1482, 0.6931472
      %v1484 = vlog2.pop %v1467
      %v1485 = vmul.f32 %v1484, 0.6931472
      %v1486 = vlog2.pop %v1468
      %v1487 = vmul.f32 %v1486, 0.6931472
      %v1488 = vlog2.pop %v1469
      %v1489 = vmul.f32 %v1488, 0.6931472
      %v1490 = vlog2.pop %v1470
      %v1491 = vmul.f32 %v1490, 0.6931472
      %v1492 = vlog2.pop %v1471
      %v1493 = vmul.f32 %v1492, 0.6931472
      %v1494 = vlog2.pop %v1472
      %v1495 = vmul.f32 %v1494, 0.6931472
      %v1496 = vlog2.pop %v1473
      %v1497 = vmul.f32 %v1496, 0.6931472
      %v1498 = vlog2.pop %v1474
      %v1499 = vmul.f32 %v1498, 0.6931472
      %v1500 = vlog2.pop %v1475
      %v1501 = vmul.f32 %v1500, 0.6931472
      %v1502 = vlog2.pop %v1476
      %v1503 = vmul.f32 %v1502, 0.6931472
      %v1504 = vlog2.pop %v1477
      %v1505 = vmul.f32 %v1504, 0.6931472
      %v1506 = vlog2.pop %v1478
      %v1507 = vmul.f32 %v1506, 0.6931472
      %v1508 = vlog2.pop %v1479
      %v1509 = vmul.f32 %v1508, 0.6931472
      %v1510 = vlog2.pop %v1480
      %v1511 = vmul.f32 %v1510, 0.6931472
      %v1512 = vlog2.pop %v1481
      %v1513 = vmul.f32 %v1512, 0.6931472
      %v1514 = vsub.f32 %v1483, %v1160
      %v1515 = vsub.f32 %v1485, %v1162
      %v1516 = vsub.f32 %v1487, %v1164
      %v1517 = vsub.f32 %v1489, %v1166
      %v1518 = vsub.f32 %v1491, %v1168
      %v1519 = vsub.f32 %v1493, %v1170
      %v1520 = vsub.f32 %v1495, %v1172
      %v1521 = vsub.f32 %v1497, %v1174
      %v1522 = vsub.f32 %v1499, %v1176
      %v1523 = vsub.f32 %v1501, %v1178
      %v1524 = vsub.f32 %v1503, %v1180
      %v1525 = vsub.f32 %v1505, %v1182
      %v1526 = vsub.f32 %v1507, %v1184
      %v1527 = vsub.f32 %v1509, %v1186
      %v1528 = vsub.f32 %v1511, %v1188
      %v1529 = vsub.f32 %v1513, %v1190
      %v1530 = vadd.f32 %v1450, 1e-06
      %v1531 = vadd.f32 %v1451, 1e-06
      %v1532 = vadd.f32 %v1452, 1e-06
      %v1533 = vadd.f32 %v1453, 1e-06
      %v1534 = vadd.f32 %v1454, 1e-06
      %v1535 = vadd.f32 %v1455, 1e-06
      %v1536 = vadd.f32 %v1456, 1e-06
      %v1537 = vadd.f32 %v1457, 1e-06
      %v1538 = vadd.f32 %v1458, 1e-06
      %v1539 = vadd.f32 %v1459, 1e-06
      %v1540 = vadd.f32 %v1460, 1e-06
      %v1541 = vadd.f32 %v1461, 1e-06
      %v1542 = vadd.f32 %v1462, 1e-06
      %v1543 = vadd.f32 %v1463, 1e-06
      %v1544 = vadd.f32 %v1464, 1e-06
      %v1545 = vadd.f32 %v1465, 1e-06
      %v1546 = vlog2.pop %v1530
      %v1547 = vmul.f32 %v1546, 0.6931472
      %v1548 = vlog2.pop %v1531
      %v1549 = vmul.f32 %v1548, 0.6931472
      %v1550 = vlog2.pop %v1532
      %v1551 = vmul.f32 %v1550, 0.6931472
      %v1552 = vlog2.pop %v1533
      %v1553 = vmul.f32 %v1552, 0.6931472
      %v1554 = vlog2.pop %v1534
      %v1555 = vmul.f32 %v1554, 0.6931472
      %v1556 = vlog2.pop %v1535
      %v1557 = vmul.f32 %v1556, 0.6931472
      %v1558 = vlog2.pop %v1536
      %v1559 = vmul.f32 %v1558, 0.6931472
      %v1560 = vlog2.pop %v1537
      %v1561 = vmul.f32 %v1560, 0.6931472
      %v1562 = vlog2.pop %v1538
      %v1563 = vmul.f32 %v1562, 0.6931472
      %v1564 = vlog2.pop %v1539
      %v1565 = vmul.f32 %v1564, 0.6931472
      %v1566 = vlog2.pop %v1540
      %v1567 = vmul.f32 %v1566, 0.6931472
      %v1568 = vlog2.pop %v1541
      %v1569 = vmul.f32 %v1568, 0.6931472
      %v1570 = vlog2.pop %v1542
      %v1571 = vmul.f32 %v1570, 0.6931472
      %v1572 = vlog2.pop %v1543
      %v1573 = vmul.f32 %v1572, 0.6931472
      %v1574 = vlog2.pop %v1544
      %v1575 = vmul.f32 %v1574, 0.6931472
      %v1576 = vlog2.pop %v1545
      %v1577 = vmul.f32 %v1576, 0.6931472
      %v1578 = vsub.f32 %v1547, %v1160
      %v1579 = vsub.f32 %v1549, %v1162
      %v1580 = vsub.f32 %v1551, %v1164
      %v1581 = vsub.f32 %v1553, %v1166
      %v1582 = vsub.f32 %v1555, %v1168
      %v1583 = vsub.f32 %v1557, %v1170
      %v1584 = vsub.f32 %v1559, %v1172
      %v1585 = vsub.f32 %v1561, %v1174
      %v1586 = vsub.f32 %v1563, %v1176
      %v1587 = vsub.f32 %v1565, %v1178
      %v1588 = vsub.f32 %v1567, %v1180
      %v1589 = vsub.f32 %v1569, %v1182
      %v1590 = vsub.f32 %v1571, %v1184
      %v1591 = vsub.f32 %v1573, %v1186
      %v1592 = vsub.f32 %v1575, %v1188
      %v1593 = vsub.f32 %v1577, %v1190
      %v1594 = vadd.f32 %v1514, %v1578
      %v1595 = vadd.f32 %v1515, %v1579
      %v1596 = vadd.f32 %v1516, %v1580
      %v1597 = vadd.f32 %v1517, %v1581
      %v1598 = vadd.f32 %v1518, %v1582
      %v1599 = vadd.f32 %v1519, %v1583
      %v1600 = vadd.f32 %v1520, %v1584
      %v1601 = vadd.f32 %v1521, %v1585
      %v1602 = vadd.f32 %v1522, %v1586
      %v1603 = vadd.f32 %v1523, %v1587
      %v1604 = vadd.f32 %v1524, %v1588
      %v1605 = vadd.f32 %v1525, %v1589
      %v1606 = vadd.f32 %v1526, %v1590
      %v1607 = vadd.f32 %v1527, %v1591
      %v1608 = vadd.f32 %v1528, %v1592
      %v1609 = vadd.f32 %v1529, %v1593
      %v1610 = vmul.f32 %v1594, %v1258
      %v1611 = vmul.f32 %v1595, %v1259
      %v1612 = vmul.f32 %v1596, %v1260
      %v1613 = vmul.f32 %v1597, %v1261
      %v1614 = vmul.f32 %v1598, %v1262
      %v1615 = vmul.f32 %v1599, %v1263
      %v1616 = vmul.f32 %v1600, %v1264
      %v1617 = vmul.f32 %v1601, %v1265
      %v1618 = vmul.f32 %v1602, %v1266
      %v1619 = vmul.f32 %v1603, %v1267
      %v1620 = vmul.f32 %v1604, %v1268
      %v1621 = vmul.f32 %v1605, %v1269
      %v1622 = vmul.f32 %v1606, %v1270
      %v1623 = vmul.f32 %v1607, %v1271
      %v1624 = vmul.f32 %v1608, %v1272
      %v1625 = vmul.f32 %v1609, %v1273
      %vm1626 = vcmask 7168
      %v1627 = vsel %vm1626, %v1610, 0.0
      %v1628 = vsel %vm1626, %v1611, 0.0
      %v1629 = vadd.f32 %v1627, %v1628
      %v1630 = vsel %vm1626, %v1612, 0.0
      %v1631 = vadd.f32 %v1629, %v1630
      %v1632 = vsel %vm1626, %v1613, 0.0
      %v1633 = vadd.f32 %v1631, %v1632
      %v1634 = vsel %vm1626, %v1614, 0.0
      %v1635 = vadd.f32 %v1633, %v1634
      %v1636 = vsel %vm1626, %v1615, 0.0
      %v1637 = vadd.f32 %v1635, %v1636
      %v1638 = vsel %vm1626, %v1616, 0.0
      %v1639 = vadd.f32 %v1637, %v1638
      %v1640 = vsel %vm1626, %v1617, 0.0
      %v1641 = vadd.f32 %v1639, %v1640
      %v1642 = vsel %vm1626, %v1618, 0.0
      %v1643 = vadd.f32 %v1641, %v1642
      %v1644 = vsel %vm1626, %v1619, 0.0
      %v1645 = vadd.f32 %v1643, %v1644
      %v1646 = vsel %vm1626, %v1620, 0.0
      %v1647 = vadd.f32 %v1645, %v1646
      %v1648 = vsel %vm1626, %v1621, 0.0
      %v1649 = vadd.f32 %v1647, %v1648
      %v1650 = vsel %vm1626, %v1622, 0.0
      %v1651 = vadd.f32 %v1649, %v1650
      %v1652 = vsel %vm1626, %v1623, 0.0
      %v1653 = vadd.f32 %v1651, %v1652
      %v1654 = vsel %vm1626, %v1624, 0.0
      %v1655 = vadd.f32 %v1653, %v1654
      %v1656 = vsel %vm1626, %v1625, 0.0
      %v1657 = vadd.f32 %v1655, %v1656
      %1658 = vadd.xlane.f32.xlu0 %v1657
      %v1659 = vpop.xlane.xlu0 %1658
      %v1660 = vrot.slane %v1659, 4
      %v1661 = vadd.f32 %v1659, %v1660
      %v1662 = vrot.slane %v1661, 2
      %v1663 = vadd.f32 %v1661, %v1662
      %v1664 = vrot.slane %v1663, 1
      %v1665 = vadd.f32 %v1663, %v1664
      %s1666 = vtos %v1665
      %v1667 = vstv %s1666
      %1668 = vst [vmem:[#allocation14] sm:$0xff] %v1667
      %v1669 = vld [vmem:[#allocation4] sm:$0xff]
      %v1670 = vld [vmem:[#allocation4 + $0x8] sm:$0xff]
      %v1671 = vld [vmem:[#allocation4 + $0x10] sm:$0xff]
      %v1672 = vld [vmem:[#allocation4 + $0x18] sm:$0xff]
      %v1673 = vld [vmem:[#allocation4 + $0x20] sm:$0xff]
      %v1674 = vld [vmem:[#allocation4 + $0x28] sm:$0xff]
      %v1675 = vld [vmem:[#allocation4 + $0x30] sm:$0xff]
      %v1676 = vld [vmem:[#allocation4 + $0x38] sm:$0xff]
      %v1677 = vld [vmem:[#allocation4 + $0x40] sm:$0xff]
      %v1678 = vld [vmem:[#allocation4 + $0x48] sm:$0xff]
      %v1679 = vld [vmem:[#allocation4 + $0x50] sm:$0xff]
      %v1680 = vld [vmem:[#allocation4 + $0x58] sm:$0xff]
      %v1681 = vld [vmem:[#allocation4 + $0x60] sm:$0xff]
      %v1682 = vld [vmem:[#allocation4 + $0x68] sm:$0xff]
      %v1683 = vld [vmem:[#allocation4 + $0x70] sm:$0xff]
      %v1684 = vld [vmem:[#allocation4 + $0x78] sm:$0xff]
      %1685 = vadd.xlane.f32.xlu0 %v1669
      %v1686 = vpop.xlane.xlu0 %1685
      %1687 = vadd.xlane.f32.xlu0 %v1670
      %v1688 = vpop.xlane.xlu0 %1687
      %1689 = vadd.xlane.f32.xlu0 %v1671
      %v1690 = vpop.xlane.xlu0 %1689
      %1691 = vadd.xlane.f32.xlu0 %v1672
      %v1692 = vpop.xlane.xlu0 %1691
      %1693 = vadd.xlane.f32.xlu0 %v1673
      %v1694 = vpop.xlane.xlu0 %1693
      %1695 = vadd.xlane.f32.xlu0 %v1674
      %v1696 = vpop.xlane.xlu0 %1695
      %1697 = vadd.xlane.f32.xlu0 %v1675
      %v1698 = vpop.xlane.xlu0 %1697
      %1699 = vadd.xlane.f32.xlu0 %v1676
      %v1700 = vpop.xlane.xlu0 %1699
      %1701 = vadd.xlane.f32.xlu0 %v1677
      %v1702 = vpop.xlane.xlu0 %1701
      %1703 = vadd.xlane.f32.xlu0 %v1678
      %v1704 = vpop.xlane.xlu0 %1703
      %1705 = vadd.xlane.f32.xlu0 %v1679
      %v1706 = vpop.xlane.xlu0 %1705
      %1707 = vadd.xlane.f32.xlu0 %v1680
      %v1708 = vpop.xlane.xlu0 %1707
      %1709 = vadd.xlane.f32.xlu0 %v1681
      %v1710 = vpop.xlane.xlu0 %1709
      %1711 = vadd.xlane.f32.xlu0 %v1682
      %v1712 = vpop.xlane.xlu0 %1711
      %1713 = vadd.xlane.f32.xlu0 %v1683
      %v1714 = vpop.xlane.xlu0 %1713
      %1715 = vadd.xlane.f32.xlu0 %v1684
      %v1716 = vpop.xlane.xlu0 %1715
      %v1717 = vsub.f32 %v1686, 120.0
      %v1718 = vsub.f32 %v1688, 120.0
      %v1719 = vsub.f32 %v1690, 120.0
      %v1720 = vsub.f32 %v1692, 120.0
      %v1721 = vsub.f32 %v1694, 120.0
      %v1722 = vsub.f32 %v1696, 120.0
      %v1723 = vsub.f32 %v1698, 120.0
      %v1724 = vsub.f32 %v1700, 120.0
      %v1725 = vsub.f32 %v1702, 120.0
      %v1726 = vsub.f32 %v1704, 120.0
      %v1727 = vsub.f32 %v1706, 120.0
      %v1728 = vsub.f32 %v1708, 120.0
      %v1729 = vsub.f32 %v1710, 120.0
      %v1730 = vsub.f32 %v1712, 120.0
      %v1731 = vsub.f32 %v1714, 120.0
      %v1732 = vsub.f32 %v1716, 120.0
      %v1733 = vld [vmem:[#allocation5] sm:$0xff]
      %v1734 = vld [vmem:[#allocation5 + $0x8] sm:$0xff]
      %v1735 = vld [vmem:[#allocation5 + $0x10] sm:$0xff]
      %v1736 = vld [vmem:[#allocation5 + $0x18] sm:$0xff]
      %v1737 = vld [vmem:[#allocation5 + $0x20] sm:$0xff]
      %v1738 = vld [vmem:[#allocation5 + $0x28] sm:$0xff]
      %v1739 = vld [vmem:[#allocation5 + $0x30] sm:$0xff]
      %v1740 = vld [vmem:[#allocation5 + $0x38] sm:$0xff]
      %v1741 = vld [vmem:[#allocation5 + $0x40] sm:$0xff]
      %v1742 = vld [vmem:[#allocation5 + $0x48] sm:$0xff]
      %v1743 = vld [vmem:[#allocation5 + $0x50] sm:$0xff]
      %v1744 = vld [vmem:[#allocation5 + $0x58] sm:$0xff]
      %v1745 = vld [vmem:[#allocation5 + $0x60] sm:$0xff]
      %v1746 = vld [vmem:[#allocation5 + $0x68] sm:$0xff]
      %v1747 = vld [vmem:[#allocation5 + $0x70] sm:$0xff]
      %v1748 = vld [vmem:[#allocation5 + $0x78] sm:$0xff]
      %1749 = vadd.xlane.f32.xlu0 %v1733
      %v1750 = vpop.xlane.xlu0 %1749
      %1751 = vadd.xlane.f32.xlu0 %v1734
      %v1752 = vpop.xlane.xlu0 %1751
      %1753 = vadd.xlane.f32.xlu0 %v1735
      %v1754 = vpop.xlane.xlu0 %1753
      %1755 = vadd.xlane.f32.xlu0 %v1736
      %v1756 = vpop.xlane.xlu0 %1755
      %1757 = vadd.xlane.f32.xlu0 %v1737
      %v1758 = vpop.xlane.xlu0 %1757
      %1759 = vadd.xlane.f32.xlu0 %v1738
      %v1760 = vpop.xlane.xlu0 %1759
      %1761 = vadd.xlane.f32.xlu0 %v1739
      %v1762 = vpop.xlane.xlu0 %1761
      %1763 = vadd.xlane.f32.xlu0 %v1740
      %v1764 = vpop.xlane.xlu0 %1763
      %1765 = vadd.xlane.f32.xlu0 %v1741
      %v1766 = vpop.xlane.xlu0 %1765
      %1767 = vadd.xlane.f32.xlu0 %v1742
      %v1768 = vpop.xlane.xlu0 %1767
      %1769 = vadd.xlane.f32.xlu0 %v1743
      %v1770 = vpop.xlane.xlu0 %1769
      %1771 = vadd.xlane.f32.xlu0 %v1744
      %v1772 = vpop.xlane.xlu0 %1771
      %1773 = vadd.xlane.f32.xlu0 %v1745
      %v1774 = vpop.xlane.xlu0 %1773
      %1775 = vadd.xlane.f32.xlu0 %v1746
      %v1776 = vpop.xlane.xlu0 %1775
      %1777 = vadd.xlane.f32.xlu0 %v1747
      %v1778 = vpop.xlane.xlu0 %1777
      %1779 = vadd.xlane.f32.xlu0 %v1748
      %v1780 = vpop.xlane.xlu0 %1779
      %v1781 = vsub.f32 %v1750, 120.0
      %v1782 = vsub.f32 %v1752, 120.0
      %v1783 = vsub.f32 %v1754, 120.0
      %v1784 = vsub.f32 %v1756, 120.0
      %v1785 = vsub.f32 %v1758, 120.0
      %v1786 = vsub.f32 %v1760, 120.0
      %v1787 = vsub.f32 %v1762, 120.0
      %v1788 = vsub.f32 %v1764, 120.0
      %v1789 = vsub.f32 %v1766, 120.0
      %v1790 = vsub.f32 %v1768, 120.0
      %v1791 = vsub.f32 %v1770, 120.0
      %v1792 = vsub.f32 %v1772, 120.0
      %v1793 = vsub.f32 %v1774, 120.0
      %v1794 = vsub.f32 %v1776, 120.0
      %v1795 = vsub.f32 %v1778, 120.0
      %v1796 = vsub.f32 %v1780, 120.0
      %v1797 = vadd.f32 %v1717, 1e-06
      %v1798 = vadd.f32 %v1718, 1e-06
      %v1799 = vadd.f32 %v1719, 1e-06
      %v1800 = vadd.f32 %v1720, 1e-06
      %v1801 = vadd.f32 %v1721, 1e-06
      %v1802 = vadd.f32 %v1722, 1e-06
      %v1803 = vadd.f32 %v1723, 1e-06
      %v1804 = vadd.f32 %v1724, 1e-06
      %v1805 = vadd.f32 %v1725, 1e-06
      %v1806 = vadd.f32 %v1726, 1e-06
      %v1807 = vadd.f32 %v1727, 1e-06
      %v1808 = vadd.f32 %v1728, 1e-06
      %v1809 = vadd.f32 %v1729, 1e-06
      %v1810 = vadd.f32 %v1730, 1e-06
      %v1811 = vadd.f32 %v1731, 1e-06
      %v1812 = vadd.f32 %v1732, 1e-06
      %v1813 = vlog2.pop %v1797
      %v1814 = vmul.f32 %v1813, 0.6931472
      %v1815 = vlog2.pop %v1798
      %v1816 = vmul.f32 %v1815, 0.6931472
      %v1817 = vlog2.pop %v1799
      %v1818 = vmul.f32 %v1817, 0.6931472
      %v1819 = vlog2.pop %v1800
      %v1820 = vmul.f32 %v1819, 0.6931472
      %v1821 = vlog2.pop %v1801
      %v1822 = vmul.f32 %v1821, 0.6931472
      %v1823 = vlog2.pop %v1802
      %v1824 = vmul.f32 %v1823, 0.6931472
      %v1825 = vlog2.pop %v1803
      %v1826 = vmul.f32 %v1825, 0.6931472
      %v1827 = vlog2.pop %v1804
      %v1828 = vmul.f32 %v1827, 0.6931472
      %v1829 = vlog2.pop %v1805
      %v1830 = vmul.f32 %v1829, 0.6931472
      %v1831 = vlog2.pop %v1806
      %v1832 = vmul.f32 %v1831, 0.6931472
      %v1833 = vlog2.pop %v1807
      %v1834 = vmul.f32 %v1833, 0.6931472
      %v1835 = vlog2.pop %v1808
      %v1836 = vmul.f32 %v1835, 0.6931472
      %v1837 = vlog2.pop %v1809
      %v1838 = vmul.f32 %v1837, 0.6931472
      %v1839 = vlog2.pop %v1810
      %v1840 = vmul.f32 %v1839, 0.6931472
      %v1841 = vlog2.pop %v1811
      %v1842 = vmul.f32 %v1841, 0.6931472
      %v1843 = vlog2.pop %v1812
      %v1844 = vmul.f32 %v1843, 0.6931472
      %v1845 = vsub.f32 %v1814, %v1160
      %v1846 = vsub.f32 %v1816, %v1162
      %v1847 = vsub.f32 %v1818, %v1164
      %v1848 = vsub.f32 %v1820, %v1166
      %v1849 = vsub.f32 %v1822, %v1168
      %v1850 = vsub.f32 %v1824, %v1170
      %v1851 = vsub.f32 %v1826, %v1172
      %v1852 = vsub.f32 %v1828, %v1174
      %v1853 = vsub.f32 %v1830, %v1176
      %v1854 = vsub.f32 %v1832, %v1178
      %v1855 = vsub.f32 %v1834, %v1180
      %v1856 = vsub.f32 %v1836, %v1182
      %v1857 = vsub.f32 %v1838, %v1184
      %v1858 = vsub.f32 %v1840, %v1186
      %v1859 = vsub.f32 %v1842, %v1188
      %v1860 = vsub.f32 %v1844, %v1190
      %v1861 = vadd.f32 %v1781, 1e-06
      %v1862 = vadd.f32 %v1782, 1e-06
      %v1863 = vadd.f32 %v1783, 1e-06
      %v1864 = vadd.f32 %v1784, 1e-06
      %v1865 = vadd.f32 %v1785, 1e-06
      %v1866 = vadd.f32 %v1786, 1e-06
      %v1867 = vadd.f32 %v1787, 1e-06
      %v1868 = vadd.f32 %v1788, 1e-06
      %v1869 = vadd.f32 %v1789, 1e-06
      %v1870 = vadd.f32 %v1790, 1e-06
      %v1871 = vadd.f32 %v1791, 1e-06
      %v1872 = vadd.f32 %v1792, 1e-06
      %v1873 = vadd.f32 %v1793, 1e-06
      %v1874 = vadd.f32 %v1794, 1e-06
      %v1875 = vadd.f32 %v1795, 1e-06
      %v1876 = vadd.f32 %v1796, 1e-06
      %v1877 = vlog2.pop %v1861
      %v1878 = vmul.f32 %v1877, 0.6931472
      %v1879 = vlog2.pop %v1862
      %v1880 = vmul.f32 %v1879, 0.6931472
      %v1881 = vlog2.pop %v1863
      %v1882 = vmul.f32 %v1881, 0.6931472
      %v1883 = vlog2.pop %v1864
      %v1884 = vmul.f32 %v1883, 0.6931472
      %v1885 = vlog2.pop %v1865
      %v1886 = vmul.f32 %v1885, 0.6931472
      %v1887 = vlog2.pop %v1866
      %v1888 = vmul.f32 %v1887, 0.6931472
      %v1889 = vlog2.pop %v1867
      %v1890 = vmul.f32 %v1889, 0.6931472
      %v1891 = vlog2.pop %v1868
      %v1892 = vmul.f32 %v1891, 0.6931472
      %v1893 = vlog2.pop %v1869
      %v1894 = vmul.f32 %v1893, 0.6931472
      %v1895 = vlog2.pop %v1870
      %v1896 = vmul.f32 %v1895, 0.6931472
      %v1897 = vlog2.pop %v1871
      %v1898 = vmul.f32 %v1897, 0.6931472
      %v1899 = vlog2.pop %v1872
      %v1900 = vmul.f32 %v1899, 0.6931472
      %v1901 = vlog2.pop %v1873
      %v1902 = vmul.f32 %v1901, 0.6931472
      %v1903 = vlog2.pop %v1874
      %v1904 = vmul.f32 %v1903, 0.6931472
      %v1905 = vlog2.pop %v1875
      %v1906 = vmul.f32 %v1905, 0.6931472
      %v1907 = vlog2.pop %v1876
      %v1908 = vmul.f32 %v1907, 0.6931472
      %v1909 = vsub.f32 %v1878, %v1160
      %v1910 = vsub.f32 %v1880, %v1162
      %v1911 = vsub.f32 %v1882, %v1164
      %v1912 = vsub.f32 %v1884, %v1166
      %v1913 = vsub.f32 %v1886, %v1168
      %v1914 = vsub.f32 %v1888, %v1170
      %v1915 = vsub.f32 %v1890, %v1172
      %v1916 = vsub.f32 %v1892, %v1174
      %v1917 = vsub.f32 %v1894, %v1176
      %v1918 = vsub.f32 %v1896, %v1178
      %v1919 = vsub.f32 %v1898, %v1180
      %v1920 = vsub.f32 %v1900, %v1182
      %v1921 = vsub.f32 %v1902, %v1184
      %v1922 = vsub.f32 %v1904, %v1186
      %v1923 = vsub.f32 %v1906, %v1188
      %v1924 = vsub.f32 %v1908, %v1190
      %v1925 = vadd.f32 %v1845, %v1909
      %v1926 = vadd.f32 %v1846, %v1910
      %v1927 = vadd.f32 %v1847, %v1911
      %v1928 = vadd.f32 %v1848, %v1912
      %v1929 = vadd.f32 %v1849, %v1913
      %v1930 = vadd.f32 %v1850, %v1914
      %v1931 = vadd.f32 %v1851, %v1915
      %v1932 = vadd.f32 %v1852, %v1916
      %v1933 = vadd.f32 %v1853, %v1917
      %v1934 = vadd.f32 %v1854, %v1918
      %v1935 = vadd.f32 %v1855, %v1919
      %v1936 = vadd.f32 %v1856, %v1920
      %v1937 = vadd.f32 %v1857, %v1921
      %v1938 = vadd.f32 %v1858, %v1922
      %v1939 = vadd.f32 %v1859, %v1923
      %v1940 = vadd.f32 %v1860, %v1924
      %v1941 = vmul.f32 %v1925, %v1258
      %v1942 = vmul.f32 %v1926, %v1259
      %v1943 = vmul.f32 %v1927, %v1260
      %v1944 = vmul.f32 %v1928, %v1261
      %v1945 = vmul.f32 %v1929, %v1262
      %v1946 = vmul.f32 %v1930, %v1263
      %v1947 = vmul.f32 %v1931, %v1264
      %v1948 = vmul.f32 %v1932, %v1265
      %v1949 = vmul.f32 %v1933, %v1266
      %v1950 = vmul.f32 %v1934, %v1267
      %v1951 = vmul.f32 %v1935, %v1268
      %v1952 = vmul.f32 %v1936, %v1269
      %v1953 = vmul.f32 %v1937, %v1270
      %v1954 = vmul.f32 %v1938, %v1271
      %v1955 = vmul.f32 %v1939, %v1272
      %v1956 = vmul.f32 %v1940, %v1273
      %v1957 = vsel %vm1626, %v1941, 0.0
      %v1958 = vsel %vm1626, %v1942, 0.0
      %v1959 = vadd.f32 %v1957, %v1958
      %v1960 = vsel %vm1626, %v1943, 0.0
      %v1961 = vadd.f32 %v1959, %v1960
      %v1962 = vsel %vm1626, %v1944, 0.0
      %v1963 = vadd.f32 %v1961, %v1962
      %v1964 = vsel %vm1626, %v1945, 0.0
      %v1965 = vadd.f32 %v1963, %v1964
      %v1966 = vsel %vm1626, %v1946, 0.0
      %v1967 = vadd.f32 %v1965, %v1966
      %v1968 = vsel %vm1626, %v1947, 0.0
      %v1969 = vadd.f32 %v1967, %v1968
      %v1970 = vsel %vm1626, %v1948, 0.0
      %v1971 = vadd.f32 %v1969, %v1970
      %v1972 = vsel %vm1626, %v1949, 0.0
      %v1973 = vadd.f32 %v1971, %v1972
      %v1974 = vsel %vm1626, %v1950, 0.0
      %v1975 = vadd.f32 %v1973, %v1974
      %v1976 = vsel %vm1626, %v1951, 0.0
      %v1977 = vadd.f32 %v1975, %v1976
      %v1978 = vsel %vm1626, %v1952, 0.0
      %v1979 = vadd.f32 %v1977, %v1978
      %v1980 = vsel %vm1626, %v1953, 0.0
      %v1981 = vadd.f32 %v1979, %v1980
      %v1982 = vsel %vm1626, %v1954, 0.0
      %v1983 = vadd.f32 %v1981, %v1982
      %v1984 = vsel %vm1626, %v1955, 0.0
      %v1985 = vadd.f32 %v1983, %v1984
      %v1986 = vsel %vm1626, %v1956, 0.0
      %v1987 = vadd.f32 %v1985, %v1986
      %1988 = vadd.xlane.f32.xlu0 %v1987
      %v1989 = vpop.xlane.xlu0 %1988
      %v1990 = vrot.slane %v1989, 4
      %v1991 = vadd.f32 %v1989, %v1990
      %v1992 = vrot.slane %v1991, 2
      %v1993 = vadd.f32 %v1991, %v1992
      %v1994 = vrot.slane %v1993, 1
      %v1995 = vadd.f32 %v1993, %v1994
      %s1996 = vtos %v1995
      %v1997 = vstv %s1996
      %1998 = vst [vmem:[#allocation15] sm:$0xff] %v1997
    $region41: #{tpu_custom_call.1} parent=1 // pred_fallthru
      _
    // Predicated region
    $region42: #{tpu_custom_call.1} parent=1 // pred_check
      _
    $region43: #{tpu_custom_call.1} parent=1 // pred_check_branch
      %2000 = sbr.rel (0) target = $region45
    $region44: #{tpu_custom_call.1} parent=1 // pred_region
      %s2002 = ssub.s32 128, 128
      %2003 = vsyncadd [#allocation8], %s2002
      %s2005 = sshll.u32 [#allocation14], 4
      %s2006 = int_to_ptr.vmem [resolvable:$true] %s2005
      %2008 = dma.vmem_to_hbm [thread:$0]  %s2006, 128, %s4, [#allocation8]
    $region45: #{tpu_custom_call.1} parent=1 // pred_fallthru
      _
    // Predicated region
    $region46: #{tpu_custom_call.1} parent=1 // pred_check
      _
    $region47: #{tpu_custom_call.1} parent=1 // pred_check_branch
      %2010 = sbr.rel (0) target = $region49
    $region48: #{tpu_custom_call.1} parent=1 // pred_region
      %s2012 = ssub.s32 128, 128
      %2013 = vsyncadd [#allocation16], %s2012
      %s2015 = sshll.u32 [#allocation15], 4
      %s2016 = int_to_ptr.vmem [resolvable:$true] %s2015
      %2018 = dma.vmem_to_hbm [thread:$0]  %s2016, 128, %s5, [#allocation16]
    $region49: #{tpu_custom_call.1} parent=1 // pred_fallthru
      _
    // Predicated region
    $region50: #{tpu_custom_call.1} parent=1 // pred_check
      _
    $region51: #{tpu_custom_call.1} parent=1 // pred_check_branch
      %2020 = sbr.rel (0) target = $region53
    $region52: #{tpu_custom_call.1} parent=1 // pred_region
      %2021 = dma.done [#allocation8], 128
    $region53: #{tpu_custom_call.1} parent=1 // pred_fallthru
      _
    // Predicated region
    $region54: #{tpu_custom_call.1} parent=1 // pred_check
      _
    $region55: #{tpu_custom_call.1} parent=1 // pred_check_branch
      %2023 = sbr.rel (0) target = $region57
    $region56: #{tpu_custom_call.1} parent=1 // pred_region
      %2024 = dma.done [#allocation16], 128
    $region57: #{tpu_custom_call.1} parent=1 // pred_fallthru
      _
    %2025 = vsyncpa [#allocation7], 1
    %2026 = vsyncpa [#allocation10], 1
    %2027 = vsyncpa [#allocation13], 1
    %2028 = vsyncpa [#allocation8], 1
    %2029 = vsyncpa [#allocation16], 1

</llo_original>
